<compile_context>
chip_gen: v6e
topology: v6e:2x2x1
jax: 0.10.0
libtpu: 0.0.40
codegen_flags: <defaults>
</compile_context>

<pallas_src>
import functools

import jax
import jax.numpy as jnp
from jax.experimental import pallas as pl
from jax.experimental.pallas import tpu as pltpu


def _gru_decoder_kernel(x_ref, h0_ref, w_ih_ref, w_hh_ref, b_gi_ref, b_hn_ref,
                        w_out_ref, b_out_ref,
                        logp_ref, h_last_ref,
                        h_seq_ref,
                        *, hidden_size, seq_len):
    """Whole-sequence GRU decoder in a single kernel invocation (time-major).

    x_ref:      (T, B, I)   time-major inputs (whole sequence, VMEM resident)
    h0_ref:     (B, H)      initial hidden state
    w_ih_ref:   (I, 3H)     input->gates weights (transposed, gate order r,z,n)
    w_hh_ref:   (H, 3H)     hidden->gates weights (transposed)
    b_gi_ref:   (1, 3H)     b_ih with the r/z parts of b_hh pre-folded in
    b_hn_ref:   (1, H)      b_hh for the n gate only (must stay inside r*(.))
    w_out_ref:  (H, O)      output projection weights
    b_out_ref:  (1, O)
    logp_ref:   (T, B, O)   log-probabilities (output, time-major)
    h_last_ref: (B, H)      final hidden state (output)
    h_seq_ref:  (T, B, H)   VMEM scratch holding every step's hidden state
    """
    H = hidden_size
    T = seq_len
    B = x_ref.shape[1]
    I = x_ref.shape[2]
    O = w_out_ref.shape[1]

    # ---- Hoisted input->gates projection: one batched matmul for all steps ----
    # (T, B, I) -> (T*B, I) is a free leading-dim collapse (minor dim unchanged).
    x_all = x_ref[...].reshape(T * B, I).astype(jnp.bfloat16)
    w_ih_bf = w_ih_ref[...].astype(jnp.bfloat16)
    gi_all = jnp.dot(x_all, w_ih_bf,
                     preferred_element_type=jnp.float32) + b_gi_ref[...]
    gi_tb = gi_all.reshape(T, B, 3 * H)          # time-major; gi_tb[t] is free

    w_hh_bf = w_hh_ref[...].astype(jnp.bfloat16)
    b_hn_b = jnp.broadcast_to(b_hn_ref[...], (B, H))   # hoisted out of the loop

    # ---- Serial GRU recurrence (T small & static -> full unroll).            ----
    # TODO(synk): switch to lax.fori_loop(..., unroll=k) + pl.ds into a
    #             time-major gi scratch if T grows beyond ~16-32.
    h = h0_ref[...]
    for t in range(T):
        gi = gi_tb[t]                                                # (B, 3H)
        gh = jnp.dot(h.astype(jnp.bfloat16), w_hh_bf,
                     preferred_element_type=jnp.float32)             # (B, 3H)
        # PyTorch GRU gate ordering: r, z, n  (element-wise math kept in f32).
        r = jax.nn.sigmoid(gi[:, 0:H] + gh[:, 0:H])
        z = jax.nn.sigmoid(gi[:, H:2 * H] + gh[:, H:2 * H])
        n = jnp.tanh(gi[:, 2 * H:] + r * (gh[:, 2 * H:] + b_hn_b))
        h = (1.0 - z) * n + z * h
        h_seq_ref[t] = h                       # bound vreg live ranges per step

    h_last_ref[...] = h.astype(h_last_ref.dtype)

    # ---- Batched output projection + log_softmax (off the serial path) ----
    h_all = h_seq_ref[...].reshape(T * B, H).astype(jnp.bfloat16)
    logits = jnp.dot(h_all, w_out_ref[...].astype(jnp.bfloat16),
                     preferred_element_type=jnp.float32) + b_out_ref[...]
    m = jnp.max(logits, axis=-1, keepdims=True)
    lse = jnp.log(jnp.sum(jnp.exp(logits - m), axis=-1, keepdims=True)) + m
    # Single contiguous time-major slab store; the (B, T, O) transpose is done
    # in the JAX wrapper (layout plumbing, not compute).
    logp_ref[...] = (logits - lse).reshape(T, B, O).astype(logp_ref.dtype)


def decoder_rnn_forward(inputs, h0, params):
    """inputs: (B, T, I) float32, batch-first (like PyTorch batch_first=True).
       h0: (1, B, H) float32 (num_layers=1).
    Returns dict with 'outputs' (B, T, O) log-probs, 'last_hidden_state' (1, B, H),
    'decoded_tokens' (B, T)."""
    B, T, I = inputs.shape
    H = params["w_hh"].shape[0]
    O = params["w_out"].shape[1]

    inputs_tm = jnp.transpose(inputs, (1, 0, 2))     # (T, B, I), wrapper-side
    h0_2d = h0[0]                                    # (B, H)

    # Pre-fold the r/z parts of b_hh into the hoisted input-side bias; keep the
    # n-gate hidden bias separate (it must stay inside r * (h@W_hh_n + b_hh_n)).
    b_hh = params["b_hh"]
    b_gi = params["b_ih"] + jnp.concatenate(
        [b_hh[:, :2 * H], jnp.zeros((1, H), b_hh.dtype)], axis=1)   # (1, 3H)
    b_hn = b_hh[:, 2 * H:]                                          # (1, H)

    kernel = functools.partial(_gru_decoder_kernel, hidden_size=H, seq_len=T)

    flops = 2 * T * B * I * 3 * H + 2 * T * B * H * 3 * H + 2 * T * B * H * O
    transcendentals = T * B * (3 * H + O)
    bytes_accessed = 4 * (inputs.size + h0_2d.size + params["w_ih"].size
                          + params["w_hh"].size + b_gi.size + b_hn.size
                          + params["w_out"].size + params["b_out"].size
                          + B * T * O + B * H)

    grid_spec = pltpu.PrefetchScalarGridSpec(
        num_scalar_prefetch=0,
        grid=(1,),                              # recurrence fully unrolled in-kernel
        in_specs=[
            pl.BlockSpec((T, B, I), lambda i: (0, 0, 0)),   # inputs, time-major
            pl.BlockSpec((B, H), lambda i: (0, 0)),          # h0
            pl.BlockSpec((I, 3 * H), lambda i: (0, 0)),      # w_ih
            pl.BlockSpec((H, 3 * H), lambda i: (0, 0)),      # w_hh
            pl.BlockSpec((1, 3 * H), lambda i: (0, 0)),      # folded input-side bias
            pl.BlockSpec((1, H), lambda i: (0, 0)),          # b_hh (n gate)
            pl.BlockSpec((H, O), lambda i: (0, 0)),          # w_out
            pl.BlockSpec((1, O), lambda i: (0, 0)),          # b_out
        ],
        out_specs=[
            pl.BlockSpec((T, B, O), lambda i: (0, 0, 0)),    # log-probs, time-major
            pl.BlockSpec((B, H), lambda i: (0, 0)),          # final hidden
        ],
        scratch_shapes=[
            pltpu.VMEM((T, B, H), jnp.float32),              # per-step hidden states
        ],
    )

    logp_tm, h_last = pl.pallas_call(
        kernel,
        grid_spec=grid_spec,
        out_shape=(
            jax.ShapeDtypeStruct((T, B, O), jnp.float32),
            jax.ShapeDtypeStruct((B, H), jnp.float32),
        ),
        compiler_params=pltpu.CompilerParams(
            dimension_semantics=("arbitrary",),
            vmem_limit_bytes=32 * 1024 * 1024,
        ),
        cost_estimate=pl.CostEstimate(
            flops=flops,
            transcendentals=transcendentals,
            bytes_accessed=bytes_accessed,
        ),
    )(inputs_tm, h0_2d,
      params["w_ih"], params["w_hh"], b_gi, b_hn,
      params["w_out"], params["b_out"])

    logp = jnp.transpose(logp_tm, (1, 0, 2))        # (B, T, O), wrapper-side
    decoded_tokens = jnp.argmax(logp, axis=-1)      # greedy (topk(1)) glue
    return {
        "outputs": logp,                             # (B, T, O), batch-first
        "last_hidden_state": h_last[None],           # (1, B, H)
        "decoded_tokens": decoded_tokens,
        "attention_weights": None,
    }


def _reference_forward(inputs, h0, params):
    """Pure-f32 JAX reference of the same forward (PyTorch GRU semantics)."""
    H = params["w_hh"].shape[0]

    def step(h, x_t):
        gi = x_t @ params["w_ih"] + params["b_ih"]
        gh = h @ params["w_hh"] + params["b_hh"]
        r = jax.nn.sigmoid(gi[:, :H] + gh[:, :H])
        z = jax.nn.sigmoid(gi[:, H:2 * H] + gh[:, H:2 * H])
        n = jnp.tanh(gi[:, 2 * H:] + r * gh[:, 2 * H:])
        h_new = (1.0 - z) * n + z * h
        logits = h_new @ params["w_out"] + params["b_out"]
        return h_new, jax.nn.log_softmax(logits, axis=-1)

    h_last, logp_tm = jax.lax.scan(step, h0[0], jnp.transpose(inputs, (1, 0, 2)))
    return jnp.transpose(logp_tm, (1, 0, 2)), h_last[None]


def init_params(key, input_size, hidden_size, output_size):
    k = jax.random.split(key, 6)
    s = 1.0 / jnp.sqrt(hidden_size)
    # Stored pre-transposed for row-major matmuls in the kernel.
    return {
        "w_ih": jax.random.uniform(k[0], (input_size, 3 * hidden_size), jnp.float32, -s, s),
        "w_hh": jax.random.uniform(k[1], (hidden_size, 3 * hidden_size), jnp.float32, -s, s),
        "b_ih": jax.random.uniform(k[2], (1, 3 * hidden_size), jnp.float32, -s, s),
        "b_hh": jax.random.uniform(k[3], (1, 3 * hidden_size), jnp.float32, -s, s),
        "w_out": jax.random.uniform(k[4], (hidden_size, output_size), jnp.float32, -s, s),
        "b_out": jax.random.uniform(k[5], (1, output_size), jnp.float32, -s, s),
    }


if __name__ == "__main__":
    B, T, I, H, O = 8, 8, 32, 32, 64
    key = jax.random.PRNGKey(0)
    k_in, k_h, k_p = jax.random.split(key, 3)

    inputs = jax.random.normal(k_in, (B, T, I), jnp.float32)   # (batch, seq, input_size)
    h0 = jax.random.normal(k_h, (1, B, H), jnp.float32)        # (num_layers, batch, hidden)
    params = init_params(k_p, I, H, O)

    out = decoder_rnn_forward(inputs, h0, params)
    jax.block_until_ready(out["outputs"])
    jax.block_until_ready(out["last_hidden_state"])

    # Tolerance loosened vs. the pure-f32 reference because the kernel feeds the
    # MXU bf16 operands (f32 accumulation, f32 element-wise gate math).
    ref_logp, ref_h = _reference_forward(inputs, h0, params)
    assert jnp.allclose(out["outputs"], ref_logp, atol=5e-2, rtol=5e-2), (
        float(jnp.max(jnp.abs(out["outputs"] - ref_logp))))
    assert jnp.allclose(out["last_hidden_state"], ref_h, atol=5e-2, rtol=5e-2), (
        float(jnp.max(jnp.abs(out["last_hidden_state"] - ref_h))))
    assert out["outputs"].shape == (B, T, O)
    assert out["last_hidden_state"].shape == (1, B, H)
    assert out["decoded_tokens"].shape == (B, T)

    print("KERNEL_OK")
</pallas_src>

<mosaic_0001>
module attributes {stable_mosaic.version = 11 : i64} {
  func.func @_gru_decoder_kernel(%arg0: i32, %arg1: memref<8x8x32xf32, #tpu.memory_space<vmem>>, %arg2: memref<8x32xf32, #tpu.memory_space<vmem>>, %arg3: memref<32x96xf32, #tpu.memory_space<vmem>>, %arg4: memref<32x96xf32, #tpu.memory_space<vmem>>, %arg5: memref<1x96xf32, #tpu.memory_space<vmem>>, %arg6: memref<1x32xf32, #tpu.memory_space<vmem>>, %arg7: memref<32x64xf32, #tpu.memory_space<vmem>>, %arg8: memref<1x64xf32, #tpu.memory_space<vmem>>, %arg9: memref<8x8x64xf32, #tpu.memory_space<vmem>>, %arg10: memref<8x32xf32, #tpu.memory_space<vmem>>, %arg11: memref<8x8x32xf32, #tpu.memory_space<vmem>>) attributes {dimension_semantics = [#tpu.dimension_semantics<arbitrary>], iteration_bounds = array<i64: 1>, scalar_prefetch = 0 : i64, scratch_operands = 1 : i64, tpu.core_type = #tpu.core_type<tc>, window_params = [{pipeline_mode = #tpu.pipeline_mode<synchronous>, transform_indices = @transform_0, window_bounds = array<i64: 8, 8, 32>}, {pipeline_mode = #tpu.pipeline_mode<synchronous>, transform_indices = @transform_1, window_bounds = array<i64: 8, 32>}, {pipeline_mode = #tpu.pipeline_mode<synchronous>, transform_indices = @transform_2, window_bounds = array<i64: 32, 96>}, {pipeline_mode = #tpu.pipeline_mode<synchronous>, transform_indices = @transform_3, window_bounds = array<i64: 32, 96>}, {pipeline_mode = #tpu.pipeline_mode<synchronous>, transform_indices = @transform_4, window_bounds = array<i64: 1, 96>}, {pipeline_mode = #tpu.pipeline_mode<synchronous>, transform_indices = @transform_5, window_bounds = array<i64: 1, 32>}, {pipeline_mode = #tpu.pipeline_mode<synchronous>, transform_indices = @transform_6, window_bounds = array<i64: 32, 64>}, {pipeline_mode = #tpu.pipeline_mode<synchronous>, transform_indices = @transform_7, window_bounds = array<i64: 1, 64>}, {pipeline_mode = #tpu.pipeline_mode<synchronous>, transform_indices = @transform_8, window_bounds = array<i64: 8, 8, 64>}, {pipeline_mode = #tpu.pipeline_mode<synchronous>, transform_indices = @transform_9, window_bounds = array<i64: 8, 32>}]} {
    %c0 = arith.constant 0 : index
    %c0_0 = arith.constant 0 : index
    %c0_1 = arith.constant 0 : index
    %0 = vector.load %arg1[%c0, %c0_0, %c0_1] : memref<8x8x32xf32, #tpu.memory_space<vmem>>, vector<8x8x32xf32>
    %1 = vector.shape_cast %0 : vector<8x8x32xf32> to vector<64x32xf32>
    %2 = arith.truncf %1 : vector<64x32xf32> to vector<64x32xbf16>
    %c0_2 = arith.constant 0 : index
    %c0_3 = arith.constant 0 : index
    %3 = vector.load %arg3[%c0_2, %c0_3] : memref<32x96xf32, #tpu.memory_space<vmem>>, vector<32x96xf32>
    %4 = arith.truncf %3 : vector<32x96xf32> to vector<32x96xbf16>
    %cst = arith.constant dense<0.000000e+00> : vector<64x96xf32>
    %5 = tpu.matmul %2, %4, %cst {dimension_numbers = #tpu.dot_dimension_numbers<[1], [0], [0], [1], [0, 0, 1, 1], [], []>} : vector<64x32xbf16>, vector<32x96xbf16>, vector<64x96xf32> -> vector<64x96xf32>
    %c0_4 = arith.constant 0 : index
    %c0_5 = arith.constant 0 : index
    %6 = vector.load %arg5[%c0_4, %c0_5] : memref<1x96xf32, #tpu.memory_space<vmem>>, vector<1x96xf32>
    %7 = vector.broadcast %6 : vector<1x96xf32> to vector<64x96xf32>
    %8 = arith.addf %5, %7 : vector<64x96xf32>
    %9 = vector.shape_cast %8 : vector<64x96xf32> to vector<8x8x96xf32>
    %c0_6 = arith.constant 0 : index
    %c0_7 = arith.constant 0 : index
    %10 = vector.load %arg4[%c0_6, %c0_7] : memref<32x96xf32, #tpu.memory_space<vmem>>, vector<32x96xf32>
    %11 = arith.truncf %10 : vector<32x96xf32> to vector<32x96xbf16>
    %c0_8 = arith.constant 0 : index
    %c0_9 = arith.constant 0 : index
    %12 = vector.load %arg6[%c0_8, %c0_9] : memref<1x32xf32, #tpu.memory_space<vmem>>, vector<1x32xf32>
    %13 = vector.shape_cast %12 : vector<1x32xf32> to vector<1x32xf32>
    %14 = vector.broadcast %13 : vector<1x32xf32> to vector<8x32xf32>
    %c0_10 = arith.constant 0 : index
    %c0_11 = arith.constant 0 : index
    %15 = vector.load %arg2[%c0_10, %c0_11] : memref<8x32xf32, #tpu.memory_space<vmem>>, vector<8x32xf32>
    %16 = vector.extract_strided_slice %9 {offsets = [0, 0, 0], sizes = [1, 8, 96], strides = [1, 1, 1]} : vector<8x8x96xf32> to vector<1x8x96xf32>
    %17 = vector.shape_cast %16 : vector<1x8x96xf32> to vector<8x96xf32>
    %18 = arith.truncf %15 : vector<8x32xf32> to vector<8x32xbf16>
    %cst_12 = arith.constant dense<0.000000e+00> : vector<8x96xf32>
    %19 = tpu.matmul %18, %11, %cst_12 {dimension_numbers = #tpu.dot_dimension_numbers<[1], [0], [0], [1], [0, 0, 1, 1], [], []>} : vector<8x32xbf16>, vector<32x96xbf16>, vector<8x96xf32> -> vector<8x96xf32>
    %20 = vector.extract_strided_slice %17 {offsets = [0, 0], sizes = [8, 32], strides = [1, 1]} : vector<8x96xf32> to vector<8x32xf32>
    %21 = vector.extract_strided_slice %19 {offsets = [0, 0], sizes = [8, 32], strides = [1, 1]} : vector<8x96xf32> to vector<8x32xf32>
    %22 = arith.addf %20, %21 : vector<8x32xf32>
    %23 = arith.negf %22 : vector<8x32xf32>
    %24 = math.exp %23 : vector<8x32xf32>
    %cst_13 = arith.constant 1.000000e+00 : f32
    %25 = vector.broadcast %cst_13 : f32 to vector<8x32xf32>
    %26 = arith.addf %25, %24 : vector<8x32xf32>
    %27 = arith.divf %25, %26 : vector<8x32xf32>
    %28 = vector.extract_strided_slice %17 {offsets = [0, 32], sizes = [8, 32], strides = [1, 1]} : vector<8x96xf32> to vector<8x32xf32>
    %29 = vector.extract_strided_slice %19 {offsets = [0, 32], sizes = [8, 32], strides = [1, 1]} : vector<8x96xf32> to vector<8x32xf32>
    %30 = arith.addf %28, %29 : vector<8x32xf32>
    %31 = arith.negf %30 : vector<8x32xf32>
    %32 = math.exp %31 : vector<8x32xf32>
    %cst_14 = arith.constant 1.000000e+00 : f32
    %33 = vector.broadcast %cst_14 : f32 to vector<8x32xf32>
    %34 = arith.addf %33, %32 : vector<8x32xf32>
    %35 = arith.divf %33, %34 : vector<8x32xf32>
    %36 = vector.extract_strided_slice %17 {offsets = [0, 64], sizes = [8, 32], strides = [1, 1]} : vector<8x96xf32> to vector<8x32xf32>
    %37 = vector.extract_strided_slice %19 {offsets = [0, 64], sizes = [8, 32], strides = [1, 1]} : vector<8x96xf32> to vector<8x32xf32>
    %38 = arith.addf %37, %14 : vector<8x32xf32>
    %39 = arith.mulf %27, %38 : vector<8x32xf32>
    %40 = arith.addf %36, %39 : vector<8x32xf32>
    %41 = math.tanh %40 : vector<8x32xf32>
    %cst_15 = arith.constant 1.000000e+00 : f32
    %42 = vector.broadcast %cst_15 : f32 to vector<8x32xf32>
    %43 = arith.subf %42, %35 : vector<8x32xf32>
    %44 = arith.mulf %43, %41 : vector<8x32xf32>
    %45 = arith.mulf %35, %15 : vector<8x32xf32>
    %46 = arith.addf %44, %45 : vector<8x32xf32>
    %c0_16 = arith.constant 0 : index
    %c0_17 = arith.constant 0 : index
    %c0_18 = arith.constant 0 : index
    %47 = vector.load %arg11[%c0_16, %c0_17, %c0_18] : memref<8x8x32xf32, #tpu.memory_space<vmem>>, vector<1x8x32xf32>
    %48 = vector.shape_cast %47 : vector<1x8x32xf32> to vector<8x32xf32>
    %49 = vector.shape_cast %46 : vector<8x32xf32> to vector<1x8x32xf32>
    tpu.vector_store %arg11[%c0_16, %c0_17, %c0_18], %49 {strides = array<i32>} : memref<8x8x32xf32, #tpu.memory_space<vmem>>, vector<1x8x32xf32>,
    %50 = vector.extract_strided_slice %9 {offsets = [1, 0, 0], sizes = [1, 8, 96], strides = [1, 1, 1]} : vector<8x8x96xf32> to vector<1x8x96xf32>
    %51 = vector.shape_cast %50 : vector<1x8x96xf32> to vector<8x96xf32>
    %52 = arith.truncf %46 : vector<8x32xf32> to vector<8x32xbf16>
    %cst_19 = arith.constant dense<0.000000e+00> : vector<8x96xf32>
    %53 = tpu.matmul %52, %11, %cst_19 {dimension_numbers = #tpu.dot_dimension_numbers<[1], [0], [0], [1], [0, 0, 1, 1], [], []>} : vector<8x32xbf16>, vector<32x96xbf16>, vector<8x96xf32> -> vector<8x96xf32>
    %54 = vector.extract_strided_slice %51 {offsets = [0, 0], sizes = [8, 32], strides = [1, 1]} : vector<8x96xf32> to vector<8x32xf32>
    %55 = vector.extract_strided_slice %53 {offsets = [0, 0], sizes = [8, 32], strides = [1, 1]} : vector<8x96xf32> to vector<8x32xf32>
    %56 = arith.addf %54, %55 : vector<8x32xf32>
    %57 = arith.negf %56 : vector<8x32xf32>
    %58 = math.exp %57 : vector<8x32xf32>
    %cst_20 = arith.constant 1.000000e+00 : f32
    %59 = vector.broadcast %cst_20 : f32 to vector<8x32xf32>
    %60 = arith.addf %59, %58 : vector<8x32xf32>
    %61 = arith.divf %59, %60 : vector<8x32xf32>
    %62 = vector.extract_strided_slice %51 {offsets = [0, 32], sizes = [8, 32], strides = [1, 1]} : vector<8x96xf32> to vector<8x32xf32>
    %63 = vector.extract_strided_slice %53 {offsets = [0, 32], sizes = [8, 32], strides = [1, 1]} : vector<8x96xf32> to vector<8x32xf32>
    %64 = arith.addf %62, %63 : vector<8x32xf32>
    %65 = arith.negf %64 : vector<8x32xf32>
    %66 = math.exp %65 : vector<8x32xf32>
    %cst_21 = arith.constant 1.000000e+00 : f32
    %67 = vector.broadcast %cst_21 : f32 to vector<8x32xf32>
    %68 = arith.addf %67, %66 : vector<8x32xf32>
    %69 = arith.divf %67, %68 : vector<8x32xf32>
    %70 = vector.extract_strided_slice %51 {offsets = [0, 64], sizes = [8, 32], strides = [1, 1]} : vector<8x96xf32> to vector<8x32xf32>
    %71 = vector.extract_strided_slice %53 {offsets = [0, 64], sizes = [8, 32], strides = [1, 1]} : vector<8x96xf32> to vector<8x32xf32>
    %72 = arith.addf %71, %14 : vector<8x32xf32>
    %73 = arith.mulf %61, %72 : vector<8x32xf32>
    %74 = arith.addf %70, %73 : vector<8x32xf32>
    %75 = math.tanh %74 : vector<8x32xf32>
    %cst_22 = arith.constant 1.000000e+00 : f32
    %76 = vector.broadcast %cst_22 : f32 to vector<8x32xf32>
    %77 = arith.subf %76, %69 : vector<8x32xf32>
    %78 = arith.mulf %77, %75 : vector<8x32xf32>
    %79 = arith.mulf %69, %46 : vector<8x32xf32>
    %80 = arith.addf %78, %79 : vector<8x32xf32>
    %c1 = arith.constant 1 : index
    %c0_23 = arith.constant 0 : index
    %c0_24 = arith.constant 0 : index
    %81 = vector.load %arg11[%c1, %c0_23, %c0_24] : memref<8x8x32xf32, #tpu.memory_space<vmem>>, vector<1x8x32xf32>
    %82 = vector.shape_cast %81 : vector<1x8x32xf32> to vector<8x32xf32>
    %83 = vector.shape_cast %80 : vector<8x32xf32> to vector<1x8x32xf32>
    tpu.vector_store %arg11[%c1, %c0_23, %c0_24], %83 {strides = array<i32>} : memref<8x8x32xf32, #tpu.memory_space<vmem>>, vector<1x8x32xf32>,
    %84 = vector.extract_strided_slice %9 {offsets = [2, 0, 0], sizes = [1, 8, 96], strides = [1, 1, 1]} : vector<8x8x96xf32> to vector<1x8x96xf32>
    %85 = vector.shape_cast %84 : vector<1x8x96xf32> to vector<8x96xf32>
    %86 = arith.truncf %80 : vector<8x32xf32> to vector<8x32xbf16>
    %cst_25 = arith.constant dense<0.000000e+00> : vector<8x96xf32>
    %87 = tpu.matmul %86, %11, %cst_25 {dimension_numbers = #tpu.dot_dimension_numbers<[1], [0], [0], [1], [0, 0, 1, 1], [], []>} : vector<8x32xbf16>, vector<32x96xbf16>, vector<8x96xf32> -> vector<8x96xf32>
    %88 = vector.extract_strided_slice %85 {offsets = [0, 0], sizes = [8, 32], strides = [1, 1]} : vector<8x96xf32> to vector<8x32xf32>
    %89 = vector.extract_strided_slice %87 {offsets = [0, 0], sizes = [8, 32], strides = [1, 1]} : vector<8x96xf32> to vector<8x32xf32>
    %90 = arith.addf %88, %89 : vector<8x32xf32>
    %91 = arith.negf %90 : vector<8x32xf32>
    %92 = math.exp %91 : vector<8x32xf32>
    %cst_26 = arith.constant 1.000000e+00 : f32
    %93 = vector.broadcast %cst_26 : f32 to vector<8x32xf32>
    %94 = arith.addf %93, %92 : vector<8x32xf32>
    %95 = arith.divf %93, %94 : vector<8x32xf32>
    %96 = vector.extract_strided_slice %85 {offsets = [0, 32], sizes = [8, 32], strides = [1, 1]} : vector<8x96xf32> to vector<8x32xf32>
    %97 = vector.extract_strided_slice %87 {offsets = [0, 32], sizes = [8, 32], strides = [1, 1]} : vector<8x96xf32> to vector<8x32xf32>
    %98 = arith.addf %96, %97 : vector<8x32xf32>
    %99 = arith.negf %98 : vector<8x32xf32>
    %100 = math.exp %99 : vector<8x32xf32>
    %cst_27 = arith.constant 1.000000e+00 : f32
    %101 = vector.broadcast %cst_27 : f32 to vector<8x32xf32>
    %102 = arith.addf %101, %100 : vector<8x32xf32>
    %103 = arith.divf %101, %102 : vector<8x32xf32>
    %104 = vector.extract_strided_slice %85 {offsets = [0, 64], sizes = [8, 32], strides = [1, 1]} : vector<8x96xf32> to vector<8x32xf32>
    %105 = vector.extract_strided_slice %87 {offsets = [0, 64], sizes = [8, 32], strides = [1, 1]} : vector<8x96xf32> to vector<8x32xf32>
    %106 = arith.addf %105, %14 : vector<8x32xf32>
    %107 = arith.mulf %95, %106 : vector<8x32xf32>
    %108 = arith.addf %104, %107 : vector<8x32xf32>
    %109 = math.tanh %108 : vector<8x32xf32>
    %cst_28 = arith.constant 1.000000e+00 : f32
    %110 = vector.broadcast %cst_28 : f32 to vector<8x32xf32>
    %111 = arith.subf %110, %103 : vector<8x32xf32>
    %112 = arith.mulf %111, %109 : vector<8x32xf32>
    %113 = arith.mulf %103, %80 : vector<8x32xf32>
    %114 = arith.addf %112, %113 : vector<8x32xf32>
    %c2 = arith.constant 2 : index
    %c0_29 = arith.constant 0 : index
    %c0_30 = arith.constant 0 : index
    %115 = vector.load %arg11[%c2, %c0_29, %c0_30] : memref<8x8x32xf32, #tpu.memory_space<vmem>>, vector<1x8x32xf32>
    %116 = vector.shape_cast %115 : vector<1x8x32xf32> to vector<8x32xf32>
    %117 = vector.shape_cast %114 : vector<8x32xf32> to vector<1x8x32xf32>
    tpu.vector_store %arg11[%c2, %c0_29, %c0_30], %117 {strides = array<i32>} : memref<8x8x32xf32, #tpu.memory_space<vmem>>, vector<1x8x32xf32>,
    %118 = vector.extract_strided_slice %9 {offsets = [3, 0, 0], sizes = [1, 8, 96], strides = [1, 1, 1]} : vector<8x8x96xf32> to vector<1x8x96xf32>
    %119 = vector.shape_cast %118 : vector<1x8x96xf32> to vector<8x96xf32>
    %120 = arith.truncf %114 : vector<8x32xf32> to vector<8x32xbf16>
    %cst_31 = arith.constant dense<0.000000e+00> : vector<8x96xf32>
    %121 = tpu.matmul %120, %11, %cst_31 {dimension_numbers = #tpu.dot_dimension_numbers<[1], [0], [0], [1], [0, 0, 1, 1], [], []>} : vector<8x32xbf16>, vector<32x96xbf16>, vector<8x96xf32> -> vector<8x96xf32>
    %122 = vector.extract_strided_slice %119 {offsets = [0, 0], sizes = [8, 32], strides = [1, 1]} : vector<8x96xf32> to vector<8x32xf32>
    %123 = vector.extract_strided_slice %121 {offsets = [0, 0], sizes = [8, 32], strides = [1, 1]} : vector<8x96xf32> to vector<8x32xf32>
    %124 = arith.addf %122, %123 : vector<8x32xf32>
    %125 = arith.negf %124 : vector<8x32xf32>
    %126 = math.exp %125 : vector<8x32xf32>
    %cst_32 = arith.constant 1.000000e+00 : f32
    %127 = vector.broadcast %cst_32 : f32 to vector<8x32xf32>
    %128 = arith.addf %127, %126 : vector<8x32xf32>
    %129 = arith.divf %127, %128 : vector<8x32xf32>
    %130 = vector.extract_strided_slice %119 {offsets = [0, 32], sizes = [8, 32], strides = [1, 1]} : vector<8x96xf32> to vector<8x32xf32>
    %131 = vector.extract_strided_slice %121 {offsets = [0, 32], sizes = [8, 32], strides = [1, 1]} : vector<8x96xf32> to vector<8x32xf32>
    %132 = arith.addf %130, %131 : vector<8x32xf32>
    %133 = arith.negf %132 : vector<8x32xf32>
    %134 = math.exp %133 : vector<8x32xf32>
    %cst_33 = arith.constant 1.000000e+00 : f32
    %135 = vector.broadcast %cst_33 : f32 to vector<8x32xf32>
    %136 = arith.addf %135, %134 : vector<8x32xf32>
    %137 = arith.divf %135, %136 : vector<8x32xf32>
    %138 = vector.extract_strided_slice %119 {offsets = [0, 64], sizes = [8, 32], strides = [1, 1]} : vector<8x96xf32> to vector<8x32xf32>
    %139 = vector.extract_strided_slice %121 {offsets = [0, 64], sizes = [8, 32], strides = [1, 1]} : vector<8x96xf32> to vector<8x32xf32>
    %140 = arith.addf %139, %14 : vector<8x32xf32>
    %141 = arith.mulf %129, %140 : vector<8x32xf32>
    %142 = arith.addf %138, %141 : vector<8x32xf32>
    %143 = math.tanh %142 : vector<8x32xf32>
    %cst_34 = arith.constant 1.000000e+00 : f32
    %144 = vector.broadcast %cst_34 : f32 to vector<8x32xf32>
    %145 = arith.subf %144, %137 : vector<8x32xf32>
    %146 = arith.mulf %145, %143 : vector<8x32xf32>
    %147 = arith.mulf %137, %114 : vector<8x32xf32>
    %148 = arith.addf %146, %147 : vector<8x32xf32>
    %c3 = arith.constant 3 : index
    %c0_35 = arith.constant 0 : index
    %c0_36 = arith.constant 0 : index
    %149 = vector.load %arg11[%c3, %c0_35, %c0_36] : memref<8x8x32xf32, #tpu.memory_space<vmem>>, vector<1x8x32xf32>
    %150 = vector.shape_cast %149 : vector<1x8x32xf32> to vector<8x32xf32>
    %151 = vector.shape_cast %148 : vector<8x32xf32> to vector<1x8x32xf32>
    tpu.vector_store %arg11[%c3, %c0_35, %c0_36], %151 {strides = array<i32>} : memref<8x8x32xf32, #tpu.memory_space<vmem>>, vector<1x8x32xf32>,
    %152 = vector.extract_strided_slice %9 {offsets = [4, 0, 0], sizes = [1, 8, 96], strides = [1, 1, 1]} : vector<8x8x96xf32> to vector<1x8x96xf32>
    %153 = vector.shape_cast %152 : vector<1x8x96xf32> to vector<8x96xf32>
    %154 = arith.truncf %148 : vector<8x32xf32> to vector<8x32xbf16>
    %cst_37 = arith.constant dense<0.000000e+00> : vector<8x96xf32>
    %155 = tpu.matmul %154, %11, %cst_37 {dimension_numbers = #tpu.dot_dimension_numbers<[1], [0], [0], [1], [0, 0, 1, 1], [], []>} : vector<8x32xbf16>, vector<32x96xbf16>, vector<8x96xf32> -> vector<8x96xf32>
    %156 = vector.extract_strided_slice %153 {offsets = [0, 0], sizes = [8, 32], strides = [1, 1]} : vector<8x96xf32> to vector<8x32xf32>
    %157 = vector.extract_strided_slice %155 {offsets = [0, 0], sizes = [8, 32], strides = [1, 1]} : vector<8x96xf32> to vector<8x32xf32>
    %158 = arith.addf %156, %157 : vector<8x32xf32>
    %159 = arith.negf %158 : vector<8x32xf32>
    %160 = math.exp %159 : vector<8x32xf32>
    %cst_38 = arith.constant 1.000000e+00 : f32
    %161 = vector.broadcast %cst_38 : f32 to vector<8x32xf32>
    %162 = arith.addf %161, %160 : vector<8x32xf32>
    %163 = arith.divf %161, %162 : vector<8x32xf32>
    %164 = vector.extract_strided_slice %153 {offsets = [0, 32], sizes = [8, 32], strides = [1, 1]} : vector<8x96xf32> to vector<8x32xf32>
    %165 = vector.extract_strided_slice %155 {offsets = [0, 32], sizes = [8, 32], strides = [1, 1]} : vector<8x96xf32> to vector<8x32xf32>
    %166 = arith.addf %164, %165 : vector<8x32xf32>
    %167 = arith.negf %166 : vector<8x32xf32>
    %168 = math.exp %167 : vector<8x32xf32>
    %cst_39 = arith.constant 1.000000e+00 : f32
    %169 = vector.broadcast %cst_39 : f32 to vector<8x32xf32>
    %170 = arith.addf %169, %168 : vector<8x32xf32>
    %171 = arith.divf %169, %170 : vector<8x32xf32>
    %172 = vector.extract_strided_slice %153 {offsets = [0, 64], sizes = [8, 32], strides = [1, 1]} : vector<8x96xf32> to vector<8x32xf32>
    %173 = vector.extract_strided_slice %155 {offsets = [0, 64], sizes = [8, 32], strides = [1, 1]} : vector<8x96xf32> to vector<8x32xf32>
    %174 = arith.addf %173, %14 : vector<8x32xf32>
    %175 = arith.mulf %163, %174 : vector<8x32xf32>
    %176 = arith.addf %172, %175 : vector<8x32xf32>
    %177 = math.tanh %176 : vector<8x32xf32>
    %cst_40 = arith.constant 1.000000e+00 : f32
    %178 = vector.broadcast %cst_40 : f32 to vector<8x32xf32>
    %179 = arith.subf %178, %171 : vector<8x32xf32>
    %180 = arith.mulf %179, %177 : vector<8x32xf32>
    %181 = arith.mulf %171, %148 : vector<8x32xf32>
    %182 = arith.addf %180, %181 : vector<8x32xf32>
    %c4 = arith.constant 4 : index
    %c0_41 = arith.constant 0 : index
    %c0_42 = arith.constant 0 : index
    %183 = vector.load %arg11[%c4, %c0_41, %c0_42] : memref<8x8x32xf32, #tpu.memory_space<vmem>>, vector<1x8x32xf32>
    %184 = vector.shape_cast %183 : vector<1x8x32xf32> to vector<8x32xf32>
    %185 = vector.shape_cast %182 : vector<8x32xf32> to vector<1x8x32xf32>
    tpu.vector_store %arg11[%c4, %c0_41, %c0_42], %185 {strides = array<i32>} : memref<8x8x32xf32, #tpu.memory_space<vmem>>, vector<1x8x32xf32>,
    %186 = vector.extract_strided_slice %9 {offsets = [5, 0, 0], sizes = [1, 8, 96], strides = [1, 1, 1]} : vector<8x8x96xf32> to vector<1x8x96xf32>
    %187 = vector.shape_cast %186 : vector<1x8x96xf32> to vector<8x96xf32>
    %188 = arith.truncf %182 : vector<8x32xf32> to vector<8x32xbf16>
    %cst_43 = arith.constant dense<0.000000e+00> : vector<8x96xf32>
    %189 = tpu.matmul %188, %11, %cst_43 {dimension_numbers = #tpu.dot_dimension_numbers<[1], [0], [0], [1], [0, 0, 1, 1], [], []>} : vector<8x32xbf16>, vector<32x96xbf16>, vector<8x96xf32> -> vector<8x96xf32>
    %190 = vector.extract_strided_slice %187 {offsets = [0, 0], sizes = [8, 32], strides = [1, 1]} : vector<8x96xf32> to vector<8x32xf32>
    %191 = vector.extract_strided_slice %189 {offsets = [0, 0], sizes = [8, 32], strides = [1, 1]} : vector<8x96xf32> to vector<8x32xf32>
    %192 = arith.addf %190, %191 : vector<8x32xf32>
    %193 = arith.negf %192 : vector<8x32xf32>
    %194 = math.exp %193 : vector<8x32xf32>
    %cst_44 = arith.constant 1.000000e+00 : f32
    %195 = vector.broadcast %cst_44 : f32 to vector<8x32xf32>
    %196 = arith.addf %195, %194 : vector<8x32xf32>
    %197 = arith.divf %195, %196 : vector<8x32xf32>
    %198 = vector.extract_strided_slice %187 {offsets = [0, 32], sizes = [8, 32], strides = [1, 1]} : vector<8x96xf32> to vector<8x32xf32>
    %199 = vector.extract_strided_slice %189 {offsets = [0, 32], sizes = [8, 32], strides = [1, 1]} : vector<8x96xf32> to vector<8x32xf32>
    %200 = arith.addf %198, %199 : vector<8x32xf32>
    %201 = arith.negf %200 : vector<8x32xf32>
    %202 = math.exp %201 : vector<8x32xf32>
    %cst_45 = arith.constant 1.000000e+00 : f32
    %203 = vector.broadcast %cst_45 : f32 to vector<8x32xf32>
    %204 = arith.addf %203, %202 : vector<8x32xf32>
    %205 = arith.divf %203, %204 : vector<8x32xf32>
    %206 = vector.extract_strided_slice %187 {offsets = [0, 64], sizes = [8, 32], strides = [1, 1]} : vector<8x96xf32> to vector<8x32xf32>
    %207 = vector.extract_strided_slice %189 {offsets = [0, 64], sizes = [8, 32], strides = [1, 1]} : vector<8x96xf32> to vector<8x32xf32>
    %208 = arith.addf %207, %14 : vector<8x32xf32>
    %209 = arith.mulf %197, %208 : vector<8x32xf32>
    %210 = arith.addf %206, %209 : vector<8x32xf32>
    %211 = math.tanh %210 : vector<8x32xf32>
    %cst_46 = arith.constant 1.000000e+00 : f32
    %212 = vector.broadcast %cst_46 : f32 to vector<8x32xf32>
    %213 = arith.subf %212, %205 : vector<8x32xf32>
    %214 = arith.mulf %213, %211 : vector<8x32xf32>
    %215 = arith.mulf %205, %182 : vector<8x32xf32>
    %216 = arith.addf %214, %215 : vector<8x32xf32>
    %c5 = arith.constant 5 : index
    %c0_47 = arith.constant 0 : index
    %c0_48 = arith.constant 0 : index
    %217 = vector.load %arg11[%c5, %c0_47, %c0_48] : memref<8x8x32xf32, #tpu.memory_space<vmem>>, vector<1x8x32xf32>
    %218 = vector.shape_cast %217 : vector<1x8x32xf32> to vector<8x32xf32>
    %219 = vector.shape_cast %216 : vector<8x32xf32> to vector<1x8x32xf32>
    tpu.vector_store %arg11[%c5, %c0_47, %c0_48], %219 {strides = array<i32>} : memref<8x8x32xf32, #tpu.memory_space<vmem>>, vector<1x8x32xf32>,
    %220 = vector.extract_strided_slice %9 {offsets = [6, 0, 0], sizes = [1, 8, 96], strides = [1, 1, 1]} : vector<8x8x96xf32> to vector<1x8x96xf32>
    %221 = vector.shape_cast %220 : vector<1x8x96xf32> to vector<8x96xf32>
    %222 = arith.truncf %216 : vector<8x32xf32> to vector<8x32xbf16>
    %cst_49 = arith.constant dense<0.000000e+00> : vector<8x96xf32>
    %223 = tpu.matmul %222, %11, %cst_49 {dimension_numbers = #tpu.dot_dimension_numbers<[1], [0], [0], [1], [0, 0, 1, 1], [], []>} : vector<8x32xbf16>, vector<32x96xbf16>, vector<8x96xf32> -> vector<8x96xf32>
    %224 = vector.extract_strided_slice %221 {offsets = [0, 0], sizes = [8, 32], strides = [1, 1]} : vector<8x96xf32> to vector<8x32xf32>
    %225 = vector.extract_strided_slice %223 {offsets = [0, 0], sizes = [8, 32], strides = [1, 1]} : vector<8x96xf32> to vector<8x32xf32>
    %226 = arith.addf %224, %225 : vector<8x32xf32>
    %227 = arith.negf %226 : vector<8x32xf32>
    %228 = math.exp %227 : vector<8x32xf32>
    %cst_50 = arith.constant 1.000000e+00 : f32
    %229 = vector.broadcast %cst_50 : f32 to vector<8x32xf32>
    %230 = arith.addf %229, %228 : vector<8x32xf32>
    %231 = arith.divf %229, %230 : vector<8x32xf32>
    %232 = vector.extract_strided_slice %221 {offsets = [0, 32], sizes = [8, 32], strides = [1, 1]} : vector<8x96xf32> to vector<8x32xf32>
    %233 = vector.extract_strided_slice %223 {offsets = [0, 32], sizes = [8, 32], strides = [1, 1]} : vector<8x96xf32> to vector<8x32xf32>
    %234 = arith.addf %232, %233 : vector<8x32xf32>
    %235 = arith.negf %234 : vector<8x32xf32>
    %236 = math.exp %235 : vector<8x32xf32>
    %cst_51 = arith.constant 1.000000e+00 : f32
    %237 = vector.broadcast %cst_51 : f32 to vector<8x32xf32>
    %238 = arith.addf %237, %236 : vector<8x32xf32>
    %239 = arith.divf %237, %238 : vector<8x32xf32>
    %240 = vector.extract_strided_slice %221 {offsets = [0, 64], sizes = [8, 32], strides = [1, 1]} : vector<8x96xf32> to vector<8x32xf32>
    %241 = vector.extract_strided_slice %223 {offsets = [0, 64], sizes = [8, 32], strides = [1, 1]} : vector<8x96xf32> to vector<8x32xf32>
    %242 = arith.addf %241, %14 : vector<8x32xf32>
    %243 = arith.mulf %231, %242 : vector<8x32xf32>
    %244 = arith.addf %240, %243 : vector<8x32xf32>
    %245 = math.tanh %244 : vector<8x32xf32>
    %cst_52 = arith.constant 1.000000e+00 : f32
    %246 = vector.broadcast %cst_52 : f32 to vector<8x32xf32>
    %247 = arith.subf %246, %239 : vector<8x32xf32>
    %248 = arith.mulf %247, %245 : vector<8x32xf32>
    %249 = arith.mulf %239, %216 : vector<8x32xf32>
    %250 = arith.addf %248, %249 : vector<8x32xf32>
    %c6 = arith.constant 6 : index
    %c0_53 = arith.constant 0 : index
    %c0_54 = arith.constant 0 : index
    %251 = vector.load %arg11[%c6, %c0_53, %c0_54] : memref<8x8x32xf32, #tpu.memory_space<vmem>>, vector<1x8x32xf32>
    %252 = vector.shape_cast %251 : vector<1x8x32xf32> to vector<8x32xf32>
    %253 = vector.shape_cast %250 : vector<8x32xf32> to vector<1x8x32xf32>
    tpu.vector_store %arg11[%c6, %c0_53, %c0_54], %253 {strides = array<i32>} : memref<8x8x32xf32, #tpu.memory_space<vmem>>, vector<1x8x32xf32>,
    %254 = vector.extract_strided_slice %9 {offsets = [7, 0, 0], sizes = [1, 8, 96], strides = [1, 1, 1]} : vector<8x8x96xf32> to vector<1x8x96xf32>
    %255 = vector.shape_cast %254 : vector<1x8x96xf32> to vector<8x96xf32>
    %256 = arith.truncf %250 : vector<8x32xf32> to vector<8x32xbf16>
    %cst_55 = arith.constant dense<0.000000e+00> : vector<8x96xf32>
    %257 = tpu.matmul %256, %11, %cst_55 {dimension_numbers = #tpu.dot_dimension_numbers<[1], [0], [0], [1], [0, 0, 1, 1], [], []>} : vector<8x32xbf16>, vector<32x96xbf16>, vector<8x96xf32> -> vector<8x96xf32>
    %258 = vector.extract_strided_slice %255 {offsets = [0, 0], sizes = [8, 32], strides = [1, 1]} : vector<8x96xf32> to vector<8x32xf32>
    %259 = vector.extract_strided_slice %257 {offsets = [0, 0], sizes = [8, 32], strides = [1, 1]} : vector<8x96xf32> to vector<8x32xf32>
    %260 = arith.addf %258, %259 : vector<8x32xf32>
    %261 = arith.negf %260 : vector<8x32xf32>
    %262 = math.exp %261 : vector<8x32xf32>
    %cst_56 = arith.constant 1.000000e+00 : f32
    %263 = vector.broadcast %cst_56 : f32 to vector<8x32xf32>
    %264 = arith.addf %263, %262 : vector<8x32xf32>
    %265 = arith.divf %263, %264 : vector<8x32xf32>
    %266 = vector.extract_strided_slice %255 {offsets = [0, 32], sizes = [8, 32], strides = [1, 1]} : vector<8x96xf32> to vector<8x32xf32>
    %267 = vector.extract_strided_slice %257 {offsets = [0, 32], sizes = [8, 32], strides = [1, 1]} : vector<8x96xf32> to vector<8x32xf32>
    %268 = arith.addf %266, %267 : vector<8x32xf32>
    %269 = arith.negf %268 : vector<8x32xf32>
    %270 = math.exp %269 : vector<8x32xf32>
    %cst_57 = arith.constant 1.000000e+00 : f32
    %271 = vector.broadcast %cst_57 : f32 to vector<8x32xf32>
    %272 = arith.addf %271, %270 : vector<8x32xf32>
    %273 = arith.divf %271, %272 : vector<8x32xf32>
    %274 = vector.extract_strided_slice %255 {offsets = [0, 64], sizes = [8, 32], strides = [1, 1]} : vector<8x96xf32> to vector<8x32xf32>
    %275 = vector.extract_strided_slice %257 {offsets = [0, 64], sizes = [8, 32], strides = [1, 1]} : vector<8x96xf32> to vector<8x32xf32>
    %276 = arith.addf %275, %14 : vector<8x32xf32>
    %277 = arith.mulf %265, %276 : vector<8x32xf32>
    %278 = arith.addf %274, %277 : vector<8x32xf32>
    %279 = math.tanh %278 : vector<8x32xf32>
    %cst_58 = arith.constant 1.000000e+00 : f32
    %280 = vector.broadcast %cst_58 : f32 to vector<8x32xf32>
    %281 = arith.subf %280, %273 : vector<8x32xf32>
    %282 = arith.mulf %281, %279 : vector<8x32xf32>
    %283 = arith.mulf %273, %250 : vector<8x32xf32>
    %284 = arith.addf %282, %283 : vector<8x32xf32>
    %c7 = arith.constant 7 : index
    %c0_59 = arith.constant 0 : index
    %c0_60 = arith.constant 0 : index
    %285 = vector.load %arg11[%c7, %c0_59, %c0_60] : memref<8x8x32xf32, #tpu.memory_space<vmem>>, vector<1x8x32xf32>
    %286 = vector.shape_cast %285 : vector<1x8x32xf32> to vector<8x32xf32>
    %287 = vector.shape_cast %284 : vector<8x32xf32> to vector<1x8x32xf32>
    tpu.vector_store %arg11[%c7, %c0_59, %c0_60], %287 {strides = array<i32>} : memref<8x8x32xf32, #tpu.memory_space<vmem>>, vector<1x8x32xf32>,
    %c0_61 = arith.constant 0 : index
    %c0_62 = arith.constant 0 : index
    %288 = vector.load %arg10[%c0_61, %c0_62] : memref<8x32xf32, #tpu.memory_space<vmem>>, vector<8x32xf32>
    tpu.vector_store %arg10[%c0_61, %c0_62], %284 {strides = array<i32>} : memref<8x32xf32, #tpu.memory_space<vmem>>, vector<8x32xf32>,
    %c0_63 = arith.constant 0 : index
    %c0_64 = arith.constant 0 : index
    %c0_65 = arith.constant 0 : index
    %289 = vector.load %arg11[%c0_63, %c0_64, %c0_65] : memref<8x8x32xf32, #tpu.memory_space<vmem>>, vector<8x8x32xf32>
    %290 = vector.shape_cast %289 : vector<8x8x32xf32> to vector<64x32xf32>
    %291 = arith.truncf %290 : vector<64x32xf32> to vector<64x32xbf16>
    %c0_66 = arith.constant 0 : index
    %c0_67 = arith.constant 0 : index
    %292 = vector.load %arg7[%c0_66, %c0_67] : memref<32x64xf32, #tpu.memory_space<vmem>>, vector<32x64xf32>
    %293 = arith.truncf %292 : vector<32x64xf32> to vector<32x64xbf16>
    %cst_68 = arith.constant dense<0.000000e+00> : vector<64x64xf32>
    %294 = tpu.matmul %291, %293, %cst_68 {dimension_numbers = #tpu.dot_dimension_numbers<[1], [0], [0], [1], [0, 0, 1, 1], [], []>} : vector<64x32xbf16>, vector<32x64xbf16>, vector<64x64xf32> -> vector<64x64xf32>
    %c0_69 = arith.constant 0 : index
    %c0_70 = arith.constant 0 : index
    %295 = vector.load %arg8[%c0_69, %c0_70] : memref<1x64xf32, #tpu.memory_space<vmem>>, vector<1x64xf32>
    %296 = vector.broadcast %295 : vector<1x64xf32> to vector<64x64xf32>
    %297 = arith.addf %294, %296 : vector<64x64xf32>
    %cst_71 = arith.constant dense<0xFF800000> : vector<64xf32>
    %298 = vector.multi_reduction <maximumf>, %297, %cst_71 [1] : vector<64x64xf32> to vector<64xf32>
    %299 = vector.shape_cast %298 : vector<64xf32> to vector<64x1xf32>
    %300 = vector.broadcast %299 : vector<64x1xf32> to vector<64x64xf32>
    %301 = arith.subf %297, %300 : vector<64x64xf32>
    %302 = math.exp %301 : vector<64x64xf32>
    %cst_72 = arith.constant dense<0.000000e+00> : vector<64xf32>
    %303 = vector.multi_reduction <add>, %302, %cst_72 [1] : vector<64x64xf32> to vector<64xf32>
    %304 = vector.shape_cast %303 : vector<64xf32> to vector<64x1xf32>
    %305 = math.log %304 : vector<64x1xf32>
    %306 = arith.addf %305, %299 : vector<64x1xf32>
    %307 = vector.broadcast %306 : vector<64x1xf32> to vector<64x64xf32>
    %308 = arith.subf %297, %307 : vector<64x64xf32>
    %309 = vector.shape_cast %308 : vector<64x64xf32> to vector<8x8x64xf32>
    %c0_73 = arith.constant 0 : index
    %c0_74 = arith.constant 0 : index
    %c0_75 = arith.constant 0 : index
    %310 = vector.load %arg9[%c0_73, %c0_74, %c0_75] : memref<8x8x64xf32, #tpu.memory_space<vmem>>, vector<8x8x64xf32>
    tpu.vector_store %arg9[%c0_73, %c0_74, %c0_75], %309 {strides = array<i32>} : memref<8x8x64xf32, #tpu.memory_space<vmem>>, vector<8x8x64xf32>,
    return
  }
  func.func @transform_0(%arg0: i32) -> (i32, i32, i32) {
    %c0_i32 = arith.constant 0 : i32
    %c0_i32_0 = arith.constant 0 : i32
    %c0_i32_1 = arith.constant 0 : i32
    %c0_i32_2 = arith.constant 0 : i32
    return %c0_i32, %c0_i32_0, %c0_i32_1 : i32, i32, i32
  }
  func.func @transform_1(%arg0: i32) -> (i32, i32) {
    %c0_i32 = arith.constant 0 : i32
    %c0_i32_0 = arith.constant 0 : i32
    %c0_i32_1 = arith.constant 0 : i32
    return %c0_i32, %c0_i32_0 : i32, i32
  }
  func.func @transform_2(%arg0: i32) -> (i32, i32) {
    %c0_i32 = arith.constant 0 : i32
    %c0_i32_0 = arith.constant 0 : i32
    %c0_i32_1 = arith.constant 0 : i32
    return %c0_i32, %c0_i32_0 : i32, i32
  }
  func.func @transform_3(%arg0: i32) -> (i32, i32) {
    %c0_i32 = arith.constant 0 : i32
    %c0_i32_0 = arith.constant 0 : i32
    %c0_i32_1 = arith.constant 0 : i32
    return %c0_i32, %c0_i32_0 : i32, i32
  }
  func.func @transform_4(%arg0: i32) -> (i32, i32) {
    %c0_i32 = arith.constant 0 : i32
    %c0_i32_0 = arith.constant 0 : i32
    %c0_i32_1 = arith.constant 0 : i32
    return %c0_i32, %c0_i32_0 : i32, i32
  }
  func.func @transform_5(%arg0: i32) -> (i32, i32) {
    %c0_i32 = arith.constant 0 : i32
    %c0_i32_0 = arith.constant 0 : i32
    %c0_i32_1 = arith.constant 0 : i32
    return %c0_i32, %c0_i32_0 : i32, i32
  }
  func.func @transform_6(%arg0: i32) -> (i32, i32) {
    %c0_i32 = arith.constant 0 : i32
    %c0_i32_0 = arith.constant 0 : i32
    %c0_i32_1 = arith.constant 0 : i32
    return %c0_i32, %c0_i32_0 : i32, i32
  }
  func.func @transform_7(%arg0: i32) -> (i32, i32) {
    %c0_i32 = arith.constant 0 : i32
    %c0_i32_0 = arith.constant 0 : i32
    %c0_i32_1 = arith.constant 0 : i32
    return %c0_i32, %c0_i32_0 : i32, i32
  }
  func.func @transform_8(%arg0: i32) -> (i32, i32, i32) {
    %c0_i32 = arith.constant 0 : i32
    %c0_i32_0 = arith.constant 0 : i32
    %c0_i32_1 = arith.constant 0 : i32
    %c0_i32_2 = arith.constant 0 : i32
    return %c0_i32, %c0_i32_0, %c0_i32_1 : i32, i32, i32
  }
  func.func @transform_9(%arg0: i32) -> (i32, i32) {
    %c0_i32 = arith.constant 0 : i32
    %c0_i32_0 = arith.constant 0 : i32
    %c0_i32_1 = arith.constant 0 : i32
    return %c0_i32, %c0_i32_0 : i32, i32
  }
}

</mosaic_0001>

<llo_original>
// kernel: tpu_custom_call.1
$region0: #{tpu_custom_call.1}
  #allocation0 [shape = 'u32[]', space=smem, size = 0x4, offset = 0x4, fixed_abs, tag = 'smem constant byte address 0x4 - core index']
  #allocation1 [shape = 'u32[144,128]{1,0:T(1,128)}', space=vmem, size = 0x12000, scoped, tag = 'internal scratch']
  #allocation2 [shape = 'f32[8,8,32]{2,1,0:T(8,128)}', space=vmem, size = 0x8000, scoped, tag = 'scratch operand']
  %s0 = inlined_call_operand.hbm [shape: f32[8,8,32], index: 0, kind: input, shape index: {}]
  %s1 = inlined_call_operand.hbm [shape: f32[8,32], index: 1, kind: input, shape index: {}]
  %s2 = inlined_call_operand.hbm [shape: f32[32,96], index: 2, kind: input, shape index: {}]
  %s3 = inlined_call_operand.hbm [shape: f32[32,96], index: 3, kind: input, shape index: {}]
  %s4 = inlined_call_operand.vmem [shape: f32[1,96], index: 4, kind: input, shape index: {}]
  %s5 = inlined_call_operand.vmem [shape: f32[1,32], index: 5, kind: input, shape index: {}]
  %s6 = inlined_call_operand.hbm [shape: f32[32,64], index: 6, kind: input, shape index: {}]
  %s7 = inlined_call_operand.vmem [shape: f32[1,64], index: 7, kind: input, shape index: {}]
  %s8 = inlined_call_operand.hbm [shape: f32[8,8,64], index: 8, kind: output, shape index: {0}]
  %s9 = inlined_call_operand.hbm [shape: f32[8,32], index: 9, kind: output, shape index: {1}]
  %10 = xla_tuple %s8, %s9
  %s11 = sld [smem:[#allocation0]]
  $region70: #{tpu_custom_call.1} parent=0
    _
  %s13 = ssub.s32 1, %s11
  %s14 = scalar_select 0, %s13, %s11
  $region1: #{tpu_custom_call.1} parent=0
    #allocation3 [shape = 'u8[32768]{0}', space=vmem, size = 0x8000, scoped, tag = 'input window, operand 0, single buffered']
    #allocation4 [shape = 's32[1]{0}', space=sflag, size = 0x4, scoped, tag = 'scoped memory for tpu_custom_call.1']
    #allocation5 [shape = 's32[1]{0}', space=sflag, size = 0x4, scoped, tag = 'scoped memory for tpu_custom_call.1']
    #allocation6 [shape = 'u8[4096]{0}', space=vmem, size = 0x1000, scoped, tag = 'input window, operand 1, single buffered']
    #allocation7 [shape = 's32[1]{0}', space=sflag, size = 0x4, scoped, tag = 'scoped memory for tpu_custom_call.1']
    #allocation8 [shape = 'u8[16384]{0}', space=vmem, size = 0x4000, scoped, tag = 'input window, operand 2, single buffered']
    #allocation9 [shape = 'u8[16384]{0}', space=vmem, size = 0x4000, scoped, tag = 'input window, operand 3, single buffered']
    #allocation10 [shape = 's32[1]{0}', space=sflag, size = 0x4, scoped, tag = 'scoped memory for tpu_custom_call.1']
    #allocation11 [shape = 'u8[16384]{0}', space=vmem, size = 0x4000, scoped, tag = 'input window, operand 6, single buffered']
    #allocation12 [shape = 'u8[32768]{0}', space=vmem, size = 0x8000, scoped, tag = 'output window, operand 0, single buffered']
    #allocation13 [shape = 'u8[4096]{0}', space=vmem, size = 0x1000, scoped, tag = 'output window, operand 1, single buffered']
    #allocation14 [shape = 's32[1]{0}', space=sflag, size = 0x4, scoped, tag = 'scoped memory for tpu_custom_call.1']
    %15 = vsyncpa [#allocation4], 0
    %16 = vsyncpa [#allocation7], 0
    %17 = vsyncpa [#allocation10], 0
    %18 = vsyncpa [#allocation5], 0
    %19 = vsyncpa [#allocation14], 0
    // Predicated region
    $region2: #{tpu_custom_call.1} parent=1 // pred_check
      _
    $region3: #{tpu_custom_call.1} parent=1 // pred_check_branch
      %21 = sbr.rel (0) target = $region5
    $region4: #{tpu_custom_call.1} parent=1 // pred_region
      %s23 = ssub.s32 1024, 1024
      %24 = vsyncadd [#allocation4], %s23
      %s25 = sshll.u32 [#allocation3], 4
      %s26 = int_to_ptr.vmem [resolvable:$true] %s25
      %31 = dma.hbm_to_vmem [thread:$0]  %s0, 1024, %s26, [#allocation4], 128, 128, 8
    $region5: #{tpu_custom_call.1} parent=1 // pred_fallthru
      _
    // Predicated region
    $region6: #{tpu_custom_call.1} parent=1 // pred_check
      _
    $region7: #{tpu_custom_call.1} parent=1 // pred_check_branch
      %33 = sbr.rel (0) target = $region9
    $region8: #{tpu_custom_call.1} parent=1 // pred_region
      %s35 = ssub.s32 128, 128
      %36 = vsyncadd [#allocation7], %s35
      %s38 = sshll.u32 [#allocation6], 4
      %s39 = int_to_ptr.vmem [resolvable:$true] %s38
      %41 = dma.hbm_to_vmem [thread:$0]  %s1, 128, %s39, [#allocation7]
    $region9: #{tpu_custom_call.1} parent=1 // pred_fallthru
      _
    // Predicated region
    $region10: #{tpu_custom_call.1} parent=1 // pred_check
      _
    $region11: #{tpu_custom_call.1} parent=1 // pred_check_branch
      %43 = sbr.rel (0) target = $region13
    $region12: #{tpu_custom_call.1} parent=1 // pred_region
      %s45 = ssub.s32 512, 512
      %46 = vsyncadd [#allocation7], %s45
      %s47 = sshll.u32 [#allocation8], 4
      %s48 = int_to_ptr.vmem [resolvable:$true] %s47
      %53 = dma.hbm_to_vmem [thread:$0]  %s2, 512, %s48, [#allocation7], 128, 128, 8
    $region13: #{tpu_custom_call.1} parent=1 // pred_fallthru
      _
    // Predicated region
    $region14: #{tpu_custom_call.1} parent=1 // pred_check
      _
    $region15: #{tpu_custom_call.1} parent=1 // pred_check_branch
      %55 = sbr.rel (0) target = $region17
    $region16: #{tpu_custom_call.1} parent=1 // pred_region
      %s57 = ssub.s32 512, 512
      %58 = vsyncadd [#allocation10], %s57
      %s59 = sshll.u32 [#allocation9], 4
      %s60 = int_to_ptr.vmem [resolvable:$true] %s59
      %65 = dma.hbm_to_vmem [thread:$0]  %s3, 512, %s60, [#allocation10], 128, 128, 8
    $region17: #{tpu_custom_call.1} parent=1 // pred_fallthru
      _
    // Predicated region
    $region18: #{tpu_custom_call.1} parent=1 // pred_check
      _
    $region19: #{tpu_custom_call.1} parent=1 // pred_check_branch
      %67 = sbr.rel (0) target = $region21
    $region20: #{tpu_custom_call.1} parent=1 // pred_region
      _
    $region21: #{tpu_custom_call.1} parent=1 // pred_fallthru
      _
    // Predicated region
    $region22: #{tpu_custom_call.1} parent=1 // pred_check
      _
    $region23: #{tpu_custom_call.1} parent=1 // pred_check_branch
      %69 = sbr.rel (0) target = $region25
    $region24: #{tpu_custom_call.1} parent=1 // pred_region
      _
    $region25: #{tpu_custom_call.1} parent=1 // pred_fallthru
      _
    // Predicated region
    $region26: #{tpu_custom_call.1} parent=1 // pred_check
      _
    $region27: #{tpu_custom_call.1} parent=1 // pred_check_branch
      %71 = sbr.rel (0) target = $region29
    $region28: #{tpu_custom_call.1} parent=1 // pred_region
      %s73 = ssub.s32 512, 512
      %74 = vsyncadd [#allocation10], %s73
      %s75 = sshll.u32 [#allocation11], 4
      %s76 = int_to_ptr.vmem [resolvable:$true] %s75
      %81 = dma.hbm_to_vmem [thread:$0]  %s6, 512, %s76, [#allocation10], 128, 128, 8
    $region29: #{tpu_custom_call.1} parent=1 // pred_fallthru
      _
    // Predicated region
    $region30: #{tpu_custom_call.1} parent=1 // pred_check
      _
    $region31: #{tpu_custom_call.1} parent=1 // pred_check_branch
      %83 = sbr.rel (0) target = $region33
    $region32: #{tpu_custom_call.1} parent=1 // pred_region
      _
    $region33: #{tpu_custom_call.1} parent=1 // pred_fallthru
      _
    // Predicated region
    $region34: #{tpu_custom_call.1} parent=1 // pred_check
      _
    $region35: #{tpu_custom_call.1} parent=1 // pred_check_branch
      %85 = sbr.rel (0) target = $region37
    $region36: #{tpu_custom_call.1} parent=1 // pred_region
      %86 = dma.done [#allocation4], 1024
    $region37: #{tpu_custom_call.1} parent=1 // pred_fallthru
      _
    // Predicated region
    $region38: #{tpu_custom_call.1} parent=1 // pred_check
      _
    $region39: #{tpu_custom_call.1} parent=1 // pred_check_branch
      %88 = sbr.rel (0) target = $region41
    $region40: #{tpu_custom_call.1} parent=1 // pred_region
      %89 = dma.done [#allocation7], 128
    $region41: #{tpu_custom_call.1} parent=1 // pred_fallthru
      _
    // Predicated region
    $region42: #{tpu_custom_call.1} parent=1 // pred_check
      _
    $region43: #{tpu_custom_call.1} parent=1 // pred_check_branch
      %91 = sbr.rel (0) target = $region45
    $region44: #{tpu_custom_call.1} parent=1 // pred_region
      %92 = dma.done [#allocation7], 512
    $region45: #{tpu_custom_call.1} parent=1 // pred_fallthru
      _
    // Predicated region
    $region46: #{tpu_custom_call.1} parent=1 // pred_check
      _
    $region47: #{tpu_custom_call.1} parent=1 // pred_check_branch
      %94 = sbr.rel (0) target = $region49
    $region48: #{tpu_custom_call.1} parent=1 // pred_region
      %95 = dma.done [#allocation10], 512
    $region49: #{tpu_custom_call.1} parent=1 // pred_fallthru
      _
    // Predicated region
    $region50: #{tpu_custom_call.1} parent=1 // pred_check
      _
    $region51: #{tpu_custom_call.1} parent=1 // pred_check_branch
      %97 = sbr.rel (0) target = $region53
    $region52: #{tpu_custom_call.1} parent=1 // pred_region
      %98 = dma.done [#allocation10], 512
    $region53: #{tpu_custom_call.1} parent=1 // pred_fallthru
      _
    %v100 = vld [vmem:[#allocation3] sm:$0xff]
    %v101 = vld [vmem:[#allocation3 + $0x8] sm:$0xff]
    %v102 = vld [vmem:[#allocation3 + $0x10] sm:$0xff]
    %v103 = vld [vmem:[#allocation3 + $0x18] sm:$0xff]
    %v104 = vld [vmem:[#allocation3 + $0x20] sm:$0xff]
    %v105 = vld [vmem:[#allocation3 + $0x28] sm:$0xff]
    %v106 = vld [vmem:[#allocation3 + $0x30] sm:$0xff]
    %v107 = vld [vmem:[#allocation3 + $0x38] sm:$0xff]
    %v108 = vpack.c.bf16 %v101, %v100
    %v109 = vpack.c.bf16 %v103, %v102
    %v110 = vpack.c.bf16 %v105, %v104
    %v111 = vpack.c.bf16 %v107, %v106
    %v112 = vld [vmem:[#allocation8] sm:$0xff]
    %v113 = vld [vmem:[#allocation8 + $0x8] sm:$0xff]
    %v114 = vld [vmem:[#allocation8 + $0x10] sm:$0xff]
    %v115 = vld [vmem:[#allocation8 + $0x18] sm:$0xff]
    %v116 = vpack.c.bf16 %v113, %v112
    %v117 = vpack.c.bf16 %v115, %v114
    %v118 = vld [vmem:[%s4] sm:$0x1]
    %v120 = vlaneseq
    %v121 = vshrl.u32 %v120, 7
    %v122 = vsub.s32 0, %v121
    %v123 = vrot.slane %v118, %v122
    %vm125 = vcmask 261120
    %v127 = vsel %vm125, %v108, 0
    %v130 = vsel %vm125, %v109, 0
    %v133 = vsel %vm125, %v110, 0
    %v136 = vsel %vm125, %v111, 0
    %138 = vmatprep.subr.bf16.mxu0 0
    %139 = vmatpush1.bf16.msra.mxu0 0
    %140 = vmatprep.subr.bf16.mxu0 0
    %141 = vmatpush1.bf16.msra.mxu0 0
    %142 = vmatprep.subr.bf16.mxu0 0
    %143 = vmatpush1.bf16.msra.mxu0 0
    %144 = vmatprep.subr.bf16.mxu0 0
    %145 = vmatpush1.bf16.msra.mxu0 0
    %146 = vmatprep.subr.bf16.mxu0 0
    %147 = vmatpush1.bf16.msra.mxu0 0
    %148 = vmatprep.subr.bf16.mxu0 0
    %149 = vmatpush1.bf16.msra.mxu0 0
    %150 = vmatprep.subr.bf16.mxu0 0
    %151 = vmatpush1.bf16.msra.mxu0 %v117
    %152 = vmatprep.subr.bf16.mxu0 0
    %153 = vmatpush1.bf16.msra.mxu0 %v116
    %154 = vmatprep.subr.bf16.mxu0 0
    %155 = vmatpush2.bf16.msra.mxu0 0
    %156 = vmatprep.subr.bf16.mxu0 0
    %157 = vmatpush2.bf16.msra.mxu0 0
    %158 = vmatprep.subr.bf16.mxu0 0
    %159 = vmatpush2.bf16.msra.mxu0 0
    %160 = vmatprep.subr.bf16.mxu0 0
    %161 = vmatpush2.bf16.msra.mxu0 0
    %162 = vmatprep.subr.bf16.mxu0 0
    %163 = vmatpush2.bf16.msra.mxu0 0
    %164 = vmatprep.subr.bf16.mxu0 0
    %165 = vmatpush2.bf16.msra.mxu0 0
    %166 = vmatprep.subr.bf16.mxu0 0
    %167 = vmatpush2.bf16.msra.mxu0 0
    %168 = vmatprep.subr.bf16.mxu0 0
    %169 = vmatpush2.bf16.msra.mxu0 0
    %170 = vmatprep.mubr.bf16.mxu0 0
    %171 = vmatmul.mubr.bf16.gmra.mxu0 %v127
    %v172 = vpop.f32.mrf.mxu0
    %v173 = vadd.f32 %v123, %v172
    %v174 = vpop.f32.mrf.mxu0
    %v175 = vpop.f32.mrf.mxu0
    %v176 = vadd.f32 %v123, %v175
    %v177 = vpop.f32.mrf.mxu0
    %178 = vmatprep.mubr.bf16.mxu0 0
    %179 = vmatmul.mubr.bf16.gmra.mxu0 %v130
    %v180 = vpop.f32.mrf.mxu0
    %v181 = vadd.f32 %v123, %v180
    %v182 = vpop.f32.mrf.mxu0
    %v183 = vpop.f32.mrf.mxu0
    %v184 = vadd.f32 %v123, %v183
    %v185 = vpop.f32.mrf.mxu0
    %186 = vmatprep.mubr.bf16.mxu0 0
    %187 = vmatmul.mubr.bf16.gmra.mxu0 %v133
    %v188 = vpop.f32.mrf.mxu0
    %v189 = vadd.f32 %v123, %v188
    %v190 = vpop.f32.mrf.mxu0
    %v191 = vpop.f32.mrf.mxu0
    %v192 = vadd.f32 %v123, %v191
    %v193 = vpop.f32.mrf.mxu0
    %194 = vmatprep.mubr.bf16.mxu0 0
    %195 = vmatmul.mubr.bf16.gmra.mxu0 %v136
    %v196 = vpop.f32.mrf.mxu0
    %v197 = vadd.f32 %v123, %v196
    %v198 = vpop.f32.mrf.mxu0
    %v199 = vpop.f32.mrf.mxu0
    %v200 = vadd.f32 %v123, %v199
    %v201 = vpop.f32.mrf.mxu0
    %202 = vdwg.mxu0
    %v203 = vld [vmem:[#allocation9] sm:$0xff]
    %v204 = vld [vmem:[#allocation9 + $0x8] sm:$0xff]
    %v205 = vld [vmem:[#allocation9 + $0x10] sm:$0xff]
    %v206 = vld [vmem:[#allocation9 + $0x18] sm:$0xff]
    %v207 = vpack.c.bf16 %v204, %v203
    %v208 = vpack.c.bf16 %v206, %v205
    %v209 = vld [vmem:[%s5] sm:$0x1]
    %v211 = vlaneseq
    %v212 = vshrl.u32 %v211, 7
    %v213 = vsub.s32 0, %v212
    %v214 = vrot.slane %v209, %v213
    %v215 = vld [vmem:[#allocation6] sm:$0xff]
    %v216 = vpack.c.bf16 %v215, %v215
    %v218 = vsel %vm125, %v216, 0
    %220 = vmatprep.subr.bf16.mxu0 0
    %221 = vmatpush1.bf16.msra.mxu0 0
    %222 = vmatprep.subr.bf16.mxu0 0
    %223 = vmatpush1.bf16.msra.mxu0 0
    %224 = vmatprep.subr.bf16.mxu0 0
    %225 = vmatpush1.bf16.msra.mxu0 0
    %226 = vmatprep.subr.bf16.mxu0 0
    %227 = vmatpush1.bf16.msra.mxu0 0
    %228 = vmatprep.subr.bf16.mxu0 0
    %229 = vmatpush1.bf16.msra.mxu0 0
    %230 = vmatprep.subr.bf16.mxu0 0
    %231 = vmatpush1.bf16.msra.mxu0 0
    %232 = vmatprep.subr.bf16.mxu0 0
    %233 = vmatpush1.bf16.msra.mxu0 %v208
    %234 = vmatprep.subr.bf16.mxu0 0
    %235 = vmatpush1.bf16.msra.mxu0 %v207
    %236 = vmatprep.subr.bf16.mxu0 0
    %237 = vmatpush2.bf16.msra.mxu0 0
    %238 = vmatprep.subr.bf16.mxu0 0
    %239 = vmatpush2.bf16.msra.mxu0 0
    %240 = vmatprep.subr.bf16.mxu0 0
    %241 = vmatpush2.bf16.msra.mxu0 0
    %242 = vmatprep.subr.bf16.mxu0 0
    %243 = vmatpush2.bf16.msra.mxu0 0
    %244 = vmatprep.subr.bf16.mxu0 0
    %245 = vmatpush2.bf16.msra.mxu0 0
    %246 = vmatprep.subr.bf16.mxu0 0
    %247 = vmatpush2.bf16.msra.mxu0 0
    %248 = vmatprep.subr.bf16.mxu0 0
    %249 = vmatpush2.bf16.msra.mxu0 0
    %250 = vmatprep.subr.bf16.mxu0 0
    %251 = vmatpush2.bf16.msra.mxu0 0
    %252 = vmatprep.mubr.bf16.mxu0 0
    %253 = vmatmul.mubr.bf16.gmra.mxu0 %v218
    %v254 = vpop.f32.mrf.mxu0
    %v255 = vadd.f32 0.0, %v254
    %v256 = vpop.f32.mrf.mxu0
    %v257 = vpop.f32.mrf.mxu0
    %v258 = vpop.f32.mrf.mxu0
    %259 = vdwg.mxu0
    %v260 = vadd.f32 %v173, %v255
    %v261 = vxor.u32 %v260, 2147483648
    %v262 = vmul.f32 %v261, 1.442695
    %v263 = vpow.pop %v262
    %v264 = vadd.f32 %v263, 1.0
    %v265 = vrcp.pop %v264
    %v266 = vmul.f32 1.0, %v265
    %267 = vrot.lane.b32.xlu0 %v214, 64
    %v268 = vpop.permute.xlu0 %267
    %v270 = vadd.f32 %v255, %v268
    %272 = vrot.lane.b32.xlu0 %v270, 64
    %v273 = vpop.permute.xlu0 %272
    %v275 = vmul.f32 %v266, %v273
    %277 = vrot.lane.b32.xlu0 %v275, 64
    %v278 = vpop.permute.xlu0 %277
    %v280 = vadd.f32 %v173, %v278
    %v281 = vtanh.pop %v280
    %v282 = vsub.f32 1.0, %v266
    %284 = vrot.lane.b32.xlu0 %v281, 96
    %v285 = vpop.permute.xlu0 %284
    %v287 = vmul.f32 %v282, %v285
    %289 = vrot.lane.b32.xlu0 %v215, 32
    %v290 = vpop.permute.xlu0 %289
    %v292 = vmul.f32 %v266, %v290
    %v293 = vadd.f32 %v287, %v292
    %295 = vrot.lane.b32.xlu0 %v293, 96
    %v296 = vpop.permute.xlu0 %295
    %298 = vst.msk [vmem:[#allocation2] sm:$0xff] %vm125, %v296
    %v299 = vpack.c.bf16 %v293, %v293
    %301 = vrot.lane.b32.xlu0 %v299, 96
    %v302 = vpop.permute.xlu0 %301
    %v304 = vsel %vm125, %v302, 0
    %306 = vmatprep.subr.bf16.mxu0 0
    %307 = vmatpush1.bf16.msra.mxu0 0
    %308 = vmatprep.subr.bf16.mxu0 0
    %309 = vmatpush1.bf16.msra.mxu0 0
    %310 = vmatprep.subr.bf16.mxu0 0
    %311 = vmatpush1.bf16.msra.mxu0 0
    %312 = vmatprep.subr.bf16.mxu0 0
    %313 = vmatpush1.bf16.msra.mxu0 0
    %314 = vmatprep.subr.bf16.mxu0 0
    %315 = vmatpush1.bf16.msra.mxu0 0
    %316 = vmatprep.subr.bf16.mxu0 0
    %317 = vmatpush1.bf16.msra.mxu0 0
    %318 = vmatprep.subr.bf16.mxu0 0
    %319 = vmatpush1.bf16.msra.mxu0 %v208
    %320 = vmatprep.subr.bf16.mxu0 0
    %321 = vmatpush1.bf16.msra.mxu0 %v207
    %322 = vmatprep.subr.bf16.mxu0 0
    %323 = vmatpush2.bf16.msra.mxu0 0
    %324 = vmatprep.subr.bf16.mxu0 0
    %325 = vmatpush2.bf16.msra.mxu0 0
    %326 = vmatprep.subr.bf16.mxu0 0
    %327 = vmatpush2.bf16.msra.mxu0 0
    %328 = vmatprep.subr.bf16.mxu0 0
    %329 = vmatpush2.bf16.msra.mxu0 0
    %330 = vmatprep.subr.bf16.mxu0 0
    %331 = vmatpush2.bf16.msra.mxu0 0
    %332 = vmatprep.subr.bf16.mxu0 0
    %333 = vmatpush2.bf16.msra.mxu0 0
    %334 = vmatprep.subr.bf16.mxu0 0
    %335 = vmatpush2.bf16.msra.mxu0 0
    %336 = vmatprep.subr.bf16.mxu0 0
    %337 = vmatpush2.bf16.msra.mxu0 0
    %338 = vmatprep.mubr.bf16.mxu0 0
    %339 = vmatmul.mubr.bf16.gmra.mxu0 %v304
    %v340 = vpop.f32.mrf.mxu0
    %v341 = vadd.f32 0.0, %v340
    %v342 = vpop.f32.mrf.mxu0
    %v343 = vpop.f32.mrf.mxu0
    %v344 = vpop.f32.mrf.mxu0
    %345 = vdwg.mxu0
    %v346 = vadd.f32 %v176, %v341
    %v347 = vxor.u32 %v346, 2147483648
    %v348 = vmul.f32 %v347, 1.442695
    %v349 = vpow.pop %v348
    %v350 = vadd.f32 %v349, 1.0
    %v351 = vrcp.pop %v350
    %v352 = vmul.f32 1.0, %v351
    %v353 = vadd.f32 %v341, %v268
    %355 = vrot.lane.b32.xlu0 %v353, 64
    %v356 = vpop.permute.xlu0 %355
    %v358 = vmul.f32 %v352, %v356
    %360 = vrot.lane.b32.xlu0 %v358, 64
    %v361 = vpop.permute.xlu0 %360
    %v363 = vadd.f32 %v176, %v361
    %v364 = vtanh.pop %v363
    %v365 = vsub.f32 1.0, %v352
    %367 = vrot.lane.b32.xlu0 %v364, 96
    %v368 = vpop.permute.xlu0 %367
    %v370 = vmul.f32 %v365, %v368
    %v371 = vmul.f32 %v352, %v293
    %v372 = vadd.f32 %v370, %v371
    %374 = vrot.lane.b32.xlu0 %v372, 96
    %v375 = vpop.permute.xlu0 %374
    %s377 = scalar_lea.vmem [#allocation2], 8
    %378 = vst.msk [vmem:[%s377] sm:$0xff] %vm125, %v375
    %v379 = vpack.c.bf16 %v372, %v372
    %381 = vrot.lane.b32.xlu0 %v379, 96
    %v382 = vpop.permute.xlu0 %381
    %v384 = vsel %vm125, %v382, 0
    %386 = vmatprep.subr.bf16.mxu0 0
    %387 = vmatpush1.bf16.msra.mxu0 0
    %388 = vmatprep.subr.bf16.mxu0 0
    %389 = vmatpush1.bf16.msra.mxu0 0
    %390 = vmatprep.subr.bf16.mxu0 0
    %391 = vmatpush1.bf16.msra.mxu0 0
    %392 = vmatprep.subr.bf16.mxu0 0
    %393 = vmatpush1.bf16.msra.mxu0 0
    %394 = vmatprep.subr.bf16.mxu0 0
    %395 = vmatpush1.bf16.msra.mxu0 0
    %396 = vmatprep.subr.bf16.mxu0 0
    %397 = vmatpush1.bf16.msra.mxu0 0
    %398 = vmatprep.subr.bf16.mxu0 0
    %399 = vmatpush1.bf16.msra.mxu0 %v208
    %400 = vmatprep.subr.bf16.mxu0 0
    %401 = vmatpush1.bf16.msra.mxu0 %v207
    %402 = vmatprep.subr.bf16.mxu0 0
    %403 = vmatpush2.bf16.msra.mxu0 0
    %404 = vmatprep.subr.bf16.mxu0 0
    %405 = vmatpush2.bf16.msra.mxu0 0
    %406 = vmatprep.subr.bf16.mxu0 0
    %407 = vmatpush2.bf16.msra.mxu0 0
    %408 = vmatprep.subr.bf16.mxu0 0
    %409 = vmatpush2.bf16.msra.mxu0 0
    %410 = vmatprep.subr.bf16.mxu0 0
    %411 = vmatpush2.bf16.msra.mxu0 0
    %412 = vmatprep.subr.bf16.mxu0 0
    %413 = vmatpush2.bf16.msra.mxu0 0
    %414 = vmatprep.subr.bf16.mxu0 0
    %415 = vmatpush2.bf16.msra.mxu0 0
    %416 = vmatprep.subr.bf16.mxu0 0
    %417 = vmatpush2.bf16.msra.mxu0 0
    %418 = vmatprep.mubr.bf16.mxu0 0
    %419 = vmatmul.mubr.bf16.gmra.mxu0 %v384
    %v420 = vpop.f32.mrf.mxu0
    %v421 = vadd.f32 0.0, %v420
    %v422 = vpop.f32.mrf.mxu0
    %v423 = vpop.f32.mrf.mxu0
    %v424 = vpop.f32.mrf.mxu0
    %425 = vdwg.mxu0
    %v426 = vadd.f32 %v181, %v421
    %v427 = vxor.u32 %v426, 2147483648
    %v428 = vmul.f32 %v427, 1.442695
    %v429 = vpow.pop %v428
    %v430 = vadd.f32 %v429, 1.0
    %v431 = vrcp.pop %v430
    %v432 = vmul.f32 1.0, %v431
    %v433 = vadd.f32 %v421, %v268
    %435 = vrot.lane.b32.xlu0 %v433, 64
    %v436 = vpop.permute.xlu0 %435
    %v438 = vmul.f32 %v432, %v436
    %440 = vrot.lane.b32.xlu0 %v438, 64
    %v441 = vpop.permute.xlu0 %440
    %v443 = vadd.f32 %v181, %v441
    %v444 = vtanh.pop %v443
    %v445 = vsub.f32 1.0, %v432
    %447 = vrot.lane.b32.xlu0 %v444, 96
    %v448 = vpop.permute.xlu0 %447
    %v450 = vmul.f32 %v445, %v448
    %v451 = vmul.f32 %v432, %v372
    %v452 = vadd.f32 %v450, %v451
    %454 = vrot.lane.b32.xlu0 %v452, 96
    %v455 = vpop.permute.xlu0 %454
    %s457 = scalar_lea.vmem [#allocation2], 16
    %458 = vst.msk [vmem:[%s457] sm:$0xff] %vm125, %v455
    %v459 = vpack.c.bf16 %v452, %v452
    %461 = vrot.lane.b32.xlu0 %v459, 96
    %v462 = vpop.permute.xlu0 %461
    %v464 = vsel %vm125, %v462, 0
    %466 = vmatprep.subr.bf16.mxu0 0
    %467 = vmatpush1.bf16.msra.mxu0 0
    %468 = vmatprep.subr.bf16.mxu0 0
    %469 = vmatpush1.bf16.msra.mxu0 0
    %470 = vmatprep.subr.bf16.mxu0 0
    %471 = vmatpush1.bf16.msra.mxu0 0
    %472 = vmatprep.subr.bf16.mxu0 0
    %473 = vmatpush1.bf16.msra.mxu0 0
    %474 = vmatprep.subr.bf16.mxu0 0
    %475 = vmatpush1.bf16.msra.mxu0 0
    %476 = vmatprep.subr.bf16.mxu0 0
    %477 = vmatpush1.bf16.msra.mxu0 0
    %478 = vmatprep.subr.bf16.mxu0 0
    %479 = vmatpush1.bf16.msra.mxu0 %v208
    %480 = vmatprep.subr.bf16.mxu0 0
    %481 = vmatpush1.bf16.msra.mxu0 %v207
    %482 = vmatprep.subr.bf16.mxu0 0
    %483 = vmatpush2.bf16.msra.mxu0 0
    %484 = vmatprep.subr.bf16.mxu0 0
    %485 = vmatpush2.bf16.msra.mxu0 0
    %486 = vmatprep.subr.bf16.mxu0 0
    %487 = vmatpush2.bf16.msra.mxu0 0
    %488 = vmatprep.subr.bf16.mxu0 0
    %489 = vmatpush2.bf16.msra.mxu0 0
    %490 = vmatprep.subr.bf16.mxu0 0
    %491 = vmatpush2.bf16.msra.mxu0 0
    %492 = vmatprep.subr.bf16.mxu0 0
    %493 = vmatpush2.bf16.msra.mxu0 0
    %494 = vmatprep.subr.bf16.mxu0 0
    %495 = vmatpush2.bf16.msra.mxu0 0
    %496 = vmatprep.subr.bf16.mxu0 0
    %497 = vmatpush2.bf16.msra.mxu0 0
    %498 = vmatprep.mubr.bf16.mxu0 0
    %499 = vmatmul.mubr.bf16.gmra.mxu0 %v464
    %v500 = vpop.f32.mrf.mxu0
    %v501 = vadd.f32 0.0, %v500
    %v502 = vpop.f32.mrf.mxu0
    %v503 = vpop.f32.mrf.mxu0
    %v504 = vpop.f32.mrf.mxu0
    %505 = vdwg.mxu0
    %v506 = vadd.f32 %v184, %v501
    %v507 = vxor.u32 %v506, 2147483648
    %v508 = vmul.f32 %v507, 1.442695
    %v509 = vpow.pop %v508
    %v510 = vadd.f32 %v509, 1.0
    %v511 = vrcp.pop %v510
    %v512 = vmul.f32 1.0, %v511
    %v513 = vadd.f32 %v501, %v268
    %515 = vrot.lane.b32.xlu0 %v513, 64
    %v516 = vpop.permute.xlu0 %515
    %v518 = vmul.f32 %v512, %v516
    %520 = vrot.lane.b32.xlu0 %v518, 64
    %v521 = vpop.permute.xlu0 %520
    %v523 = vadd.f32 %v184, %v521
    %v524 = vtanh.pop %v523
    %v525 = vsub.f32 1.0, %v512
    %527 = vrot.lane.b32.xlu0 %v524, 96
    %v528 = vpop.permute.xlu0 %527
    %v530 = vmul.f32 %v525, %v528
    %v531 = vmul.f32 %v512, %v452
    %v532 = vadd.f32 %v530, %v531
    %534 = vrot.lane.b32.xlu0 %v532, 96
    %v535 = vpop.permute.xlu0 %534
    %s537 = scalar_lea.vmem [#allocation2], 24
    %538 = vst.msk [vmem:[%s537] sm:$0xff] %vm125, %v535
    %v539 = vpack.c.bf16 %v532, %v532
    %541 = vrot.lane.b32.xlu0 %v539, 96
    %v542 = vpop.permute.xlu0 %541
    %v544 = vsel %vm125, %v542, 0
    %546 = vmatprep.subr.bf16.mxu0 0
    %547 = vmatpush1.bf16.msra.mxu0 0
    %548 = vmatprep.subr.bf16.mxu0 0
    %549 = vmatpush1.bf16.msra.mxu0 0
    %550 = vmatprep.subr.bf16.mxu0 0
    %551 = vmatpush1.bf16.msra.mxu0 0
    %552 = vmatprep.subr.bf16.mxu0 0
    %553 = vmatpush1.bf16.msra.mxu0 0
    %554 = vmatprep.subr.bf16.mxu0 0
    %555 = vmatpush1.bf16.msra.mxu0 0
    %556 = vmatprep.subr.bf16.mxu0 0
    %557 = vmatpush1.bf16.msra.mxu0 0
    %558 = vmatprep.subr.bf16.mxu0 0
    %559 = vmatpush1.bf16.msra.mxu0 %v208
    %560 = vmatprep.subr.bf16.mxu0 0
    %561 = vmatpush1.bf16.msra.mxu0 %v207
    %562 = vmatprep.subr.bf16.mxu0 0
    %563 = vmatpush2.bf16.msra.mxu0 0
    %564 = vmatprep.subr.bf16.mxu0 0
    %565 = vmatpush2.bf16.msra.mxu0 0
    %566 = vmatprep.subr.bf16.mxu0 0
    %567 = vmatpush2.bf16.msra.mxu0 0
    %568 = vmatprep.subr.bf16.mxu0 0
    %569 = vmatpush2.bf16.msra.mxu0 0
    %570 = vmatprep.subr.bf16.mxu0 0
    %571 = vmatpush2.bf16.msra.mxu0 0
    %572 = vmatprep.subr.bf16.mxu0 0
    %573 = vmatpush2.bf16.msra.mxu0 0
    %574 = vmatprep.subr.bf16.mxu0 0
    %575 = vmatpush2.bf16.msra.mxu0 0
    %576 = vmatprep.subr.bf16.mxu0 0
    %577 = vmatpush2.bf16.msra.mxu0 0
    %578 = vmatprep.mubr.bf16.mxu0 0
    %579 = vmatmul.mubr.bf16.gmra.mxu0 %v544
    %v580 = vpop.f32.mrf.mxu0
    %v581 = vadd.f32 0.0, %v580
    %v582 = vpop.f32.mrf.mxu0
    %v583 = vpop.f32.mrf.mxu0
    %v584 = vpop.f32.mrf.mxu0
    %585 = vdwg.mxu0
    %v586 = vadd.f32 %v189, %v581
    %v587 = vxor.u32 %v586, 2147483648
    %v588 = vmul.f32 %v587, 1.442695
    %v589 = vpow.pop %v588
    %v590 = vadd.f32 %v589, 1.0
    %v591 = vrcp.pop %v590
    %v592 = vmul.f32 1.0, %v591
    %v593 = vadd.f32 %v581, %v268
    %595 = vrot.lane.b32.xlu0 %v593, 64
    %v596 = vpop.permute.xlu0 %595
    %v598 = vmul.f32 %v592, %v596
    %600 = vrot.lane.b32.xlu0 %v598, 64
    %v601 = vpop.permute.xlu0 %600
    %v603 = vadd.f32 %v189, %v601
    %v604 = vtanh.pop %v603
    %v605 = vsub.f32 1.0, %v592
    %607 = vrot.lane.b32.xlu0 %v604, 96
    %v608 = vpop.permute.xlu0 %607
    %v610 = vmul.f32 %v605, %v608
    %v611 = vmul.f32 %v592, %v532
    %v612 = vadd.f32 %v610, %v611
    %614 = vrot.lane.b32.xlu0 %v612, 96
    %v615 = vpop.permute.xlu0 %614
    %s617 = scalar_lea.vmem [#allocation2], 32
    %618 = vst.msk [vmem:[%s617] sm:$0xff] %vm125, %v615
    %v619 = vpack.c.bf16 %v612, %v612
    %621 = vrot.lane.b32.xlu0 %v619, 96
    %v622 = vpop.permute.xlu0 %621
    %v624 = vsel %vm125, %v622, 0
    %626 = vmatprep.subr.bf16.mxu0 0
    %627 = vmatpush1.bf16.msra.mxu0 0
    %628 = vmatprep.subr.bf16.mxu0 0
    %629 = vmatpush1.bf16.msra.mxu0 0
    %630 = vmatprep.subr.bf16.mxu0 0
    %631 = vmatpush1.bf16.msra.mxu0 0
    %632 = vmatprep.subr.bf16.mxu0 0
    %633 = vmatpush1.bf16.msra.mxu0 0
    %634 = vmatprep.subr.bf16.mxu0 0
    %635 = vmatpush1.bf16.msra.mxu0 0
    %636 = vmatprep.subr.bf16.mxu0 0
    %637 = vmatpush1.bf16.msra.mxu0 0
    %638 = vmatprep.subr.bf16.mxu0 0
    %639 = vmatpush1.bf16.msra.mxu0 %v208
    %640 = vmatprep.subr.bf16.mxu0 0
    %641 = vmatpush1.bf16.msra.mxu0 %v207
    %642 = vmatprep.subr.bf16.mxu0 0
    %643 = vmatpush2.bf16.msra.mxu0 0
    %644 = vmatprep.subr.bf16.mxu0 0
    %645 = vmatpush2.bf16.msra.mxu0 0
    %646 = vmatprep.subr.bf16.mxu0 0
    %647 = vmatpush2.bf16.msra.mxu0 0
    %648 = vmatprep.subr.bf16.mxu0 0
    %649 = vmatpush2.bf16.msra.mxu0 0
    %650 = vmatprep.subr.bf16.mxu0 0
    %651 = vmatpush2.bf16.msra.mxu0 0
    %652 = vmatprep.subr.bf16.mxu0 0
    %653 = vmatpush2.bf16.msra.mxu0 0
    %654 = vmatprep.subr.bf16.mxu0 0
    %655 = vmatpush2.bf16.msra.mxu0 0
    %656 = vmatprep.subr.bf16.mxu0 0
    %657 = vmatpush2.bf16.msra.mxu0 0
    %658 = vmatprep.mubr.bf16.mxu0 0
    %659 = vmatmul.mubr.bf16.gmra.mxu0 %v624
    %v660 = vpop.f32.mrf.mxu0
    %v661 = vadd.f32 0.0, %v660
    %v662 = vpop.f32.mrf.mxu0
    %v663 = vpop.f32.mrf.mxu0
    %v664 = vpop.f32.mrf.mxu0
    %665 = vdwg.mxu0
    %v666 = vadd.f32 %v192, %v661
    %v667 = vxor.u32 %v666, 2147483648
    %v668 = vmul.f32 %v667, 1.442695
    %v669 = vpow.pop %v668
    %v670 = vadd.f32 %v669, 1.0
    %v671 = vrcp.pop %v670
    %v672 = vmul.f32 1.0, %v671
    %v673 = vadd.f32 %v661, %v268
    %675 = vrot.lane.b32.xlu0 %v673, 64
    %v676 = vpop.permute.xlu0 %675
    %v678 = vmul.f32 %v672, %v676
    %680 = vrot.lane.b32.xlu0 %v678, 64
    %v681 = vpop.permute.xlu0 %680
    %v683 = vadd.f32 %v192, %v681
    %v684 = vtanh.pop %v683
    %v685 = vsub.f32 1.0, %v672
    %687 = vrot.lane.b32.xlu0 %v684, 96
    %v688 = vpop.permute.xlu0 %687
    %v690 = vmul.f32 %v685, %v688
    %v691 = vmul.f32 %v672, %v612
    %v692 = vadd.f32 %v690, %v691
    %694 = vrot.lane.b32.xlu0 %v692, 96
    %v695 = vpop.permute.xlu0 %694
    %s697 = scalar_lea.vmem [#allocation2], 40
    %698 = vst.msk [vmem:[%s697] sm:$0xff] %vm125, %v695
    %v699 = vpack.c.bf16 %v692, %v692
    %701 = vrot.lane.b32.xlu0 %v699, 96
    %v702 = vpop.permute.xlu0 %701
    %v704 = vsel %vm125, %v702, 0
    %706 = vmatprep.subr.bf16.mxu0 0
    %707 = vmatpush1.bf16.msra.mxu0 0
    %708 = vmatprep.subr.bf16.mxu0 0
    %709 = vmatpush1.bf16.msra.mxu0 0
    %710 = vmatprep.subr.bf16.mxu0 0
    %711 = vmatpush1.bf16.msra.mxu0 0
    %712 = vmatprep.subr.bf16.mxu0 0
    %713 = vmatpush1.bf16.msra.mxu0 0
    %714 = vmatprep.subr.bf16.mxu0 0
    %715 = vmatpush1.bf16.msra.mxu0 0
    %716 = vmatprep.subr.bf16.mxu0 0
    %717 = vmatpush1.bf16.msra.mxu0 0
    %718 = vmatprep.subr.bf16.mxu0 0
    %719 = vmatpush1.bf16.msra.mxu0 %v208
    %720 = vmatprep.subr.bf16.mxu0 0
    %721 = vmatpush1.bf16.msra.mxu0 %v207
    %722 = vmatprep.subr.bf16.mxu0 0
    %723 = vmatpush2.bf16.msra.mxu0 0
    %724 = vmatprep.subr.bf16.mxu0 0
    %725 = vmatpush2.bf16.msra.mxu0 0
    %726 = vmatprep.subr.bf16.mxu0 0
    %727 = vmatpush2.bf16.msra.mxu0 0
    %728 = vmatprep.subr.bf16.mxu0 0
    %729 = vmatpush2.bf16.msra.mxu0 0
    %730 = vmatprep.subr.bf16.mxu0 0
    %731 = vmatpush2.bf16.msra.mxu0 0
    %732 = vmatprep.subr.bf16.mxu0 0
    %733 = vmatpush2.bf16.msra.mxu0 0
    %734 = vmatprep.subr.bf16.mxu0 0
    %735 = vmatpush2.bf16.msra.mxu0 0
    %736 = vmatprep.subr.bf16.mxu0 0
    %737 = vmatpush2.bf16.msra.mxu0 0
    %738 = vmatprep.mubr.bf16.mxu0 0
    %739 = vmatmul.mubr.bf16.gmra.mxu0 %v704
    %v740 = vpop.f32.mrf.mxu0
    %v741 = vadd.f32 0.0, %v740
    %v742 = vpop.f32.mrf.mxu0
    %v743 = vpop.f32.mrf.mxu0
    %v744 = vpop.f32.mrf.mxu0
    %745 = vdwg.mxu0
    %v746 = vadd.f32 %v197, %v741
    %v747 = vxor.u32 %v746, 2147483648
    %v748 = vmul.f32 %v747, 1.442695
    %v749 = vpow.pop %v748
    %v750 = vadd.f32 %v749, 1.0
    %v751 = vrcp.pop %v750
    %v752 = vmul.f32 1.0, %v751
    %v753 = vadd.f32 %v741, %v268
    %755 = vrot.lane.b32.xlu0 %v753, 64
    %v756 = vpop.permute.xlu0 %755
    %v758 = vmul.f32 %v752, %v756
    %760 = vrot.lane.b32.xlu0 %v758, 64
    %v761 = vpop.permute.xlu0 %760
    %v763 = vadd.f32 %v197, %v761
    %v764 = vtanh.pop %v763
    %v765 = vsub.f32 1.0, %v752
    %767 = vrot.lane.b32.xlu0 %v764, 96
    %v768 = vpop.permute.xlu0 %767
    %v770 = vmul.f32 %v765, %v768
    %v771 = vmul.f32 %v752, %v692
    %v772 = vadd.f32 %v770, %v771
    %774 = vrot.lane.b32.xlu0 %v772, 96
    %v775 = vpop.permute.xlu0 %774
    %s777 = scalar_lea.vmem [#allocation2], 48
    %778 = vst.msk [vmem:[%s777] sm:$0xff] %vm125, %v775
    %v779 = vpack.c.bf16 %v772, %v772
    %781 = vrot.lane.b32.xlu0 %v779, 96
    %v782 = vpop.permute.xlu0 %781
    %v784 = vsel %vm125, %v782, 0
    %786 = vmatprep.subr.bf16.mxu0 0
    %787 = vmatpush1.bf16.msra.mxu0 0
    %788 = vmatprep.subr.bf16.mxu0 0
    %789 = vmatpush1.bf16.msra.mxu0 0
    %790 = vmatprep.subr.bf16.mxu0 0
    %791 = vmatpush1.bf16.msra.mxu0 0
    %792 = vmatprep.subr.bf16.mxu0 0
    %793 = vmatpush1.bf16.msra.mxu0 0
    %794 = vmatprep.subr.bf16.mxu0 0
    %795 = vmatpush1.bf16.msra.mxu0 0
    %796 = vmatprep.subr.bf16.mxu0 0
    %797 = vmatpush1.bf16.msra.mxu0 0
    %798 = vmatprep.subr.bf16.mxu0 0
    %799 = vmatpush1.bf16.msra.mxu0 %v208
    %800 = vmatprep.subr.bf16.mxu0 0
    %801 = vmatpush1.bf16.msra.mxu0 %v207
    %802 = vmatprep.subr.bf16.mxu0 0
    %803 = vmatpush2.bf16.msra.mxu0 0
    %804 = vmatprep.subr.bf16.mxu0 0
    %805 = vmatpush2.bf16.msra.mxu0 0
    %806 = vmatprep.subr.bf16.mxu0 0
    %807 = vmatpush2.bf16.msra.mxu0 0
    %808 = vmatprep.subr.bf16.mxu0 0
    %809 = vmatpush2.bf16.msra.mxu0 0
    %810 = vmatprep.subr.bf16.mxu0 0
    %811 = vmatpush2.bf16.msra.mxu0 0
    %812 = vmatprep.subr.bf16.mxu0 0
    %813 = vmatpush2.bf16.msra.mxu0 0
    %814 = vmatprep.subr.bf16.mxu0 0
    %815 = vmatpush2.bf16.msra.mxu0 0
    %816 = vmatprep.subr.bf16.mxu0 0
    %817 = vmatpush2.bf16.msra.mxu0 0
    %818 = vmatprep.mubr.bf16.mxu0 0
    %819 = vmatmul.mubr.bf16.gmra.mxu0 %v784
    %v820 = vpop.f32.mrf.mxu0
    %v821 = vadd.f32 0.0, %v820
    %v822 = vpop.f32.mrf.mxu0
    %v823 = vpop.f32.mrf.mxu0
    %v824 = vpop.f32.mrf.mxu0
    %825 = vdwg.mxu0
    %v826 = vadd.f32 %v200, %v821
    %v827 = vxor.u32 %v826, 2147483648
    %v828 = vmul.f32 %v827, 1.442695
    %v829 = vpow.pop %v828
    %v830 = vadd.f32 %v829, 1.0
    %v831 = vrcp.pop %v830
    %v832 = vmul.f32 1.0, %v831
    %v833 = vadd.f32 %v821, %v268
    %835 = vrot.lane.b32.xlu0 %v833, 64
    %v836 = vpop.permute.xlu0 %835
    %v838 = vmul.f32 %v832, %v836
    %840 = vrot.lane.b32.xlu0 %v838, 64
    %v841 = vpop.permute.xlu0 %840
    %v843 = vadd.f32 %v200, %v841
    %v844 = vtanh.pop %v843
    %v845 = vsub.f32 1.0, %v832
    %847 = vrot.lane.b32.xlu0 %v844, 96
    %v848 = vpop.permute.xlu0 %847
    %v850 = vmul.f32 %v845, %v848
    %v851 = vmul.f32 %v832, %v772
    %v852 = vadd.f32 %v850, %v851
    %854 = vrot.lane.b32.xlu0 %v852, 96
    %v855 = vpop.permute.xlu0 %854
    %s857 = scalar_lea.vmem [#allocation2], 56
    %858 = vst.msk [vmem:[%s857] sm:$0xff] %vm125, %v855
    %859 = vst.msk [vmem:[#allocation13] sm:$0xff] %vm125, %v855
    %v860 = vld [vmem:[#allocation2] sm:$0xff]
    %v861 = vld [vmem:[#allocation2 + $0x8] sm:$0xff]
    %v862 = vld [vmem:[#allocation2 + $0x10] sm:$0xff]
    %v863 = vld [vmem:[#allocation2 + $0x18] sm:$0xff]
    %v864 = vld [vmem:[#allocation2 + $0x20] sm:$0xff]
    %v865 = vld [vmem:[#allocation2 + $0x28] sm:$0xff]
    %v866 = vld [vmem:[#allocation2 + $0x30] sm:$0xff]
    %v867 = vld [vmem:[#allocation2 + $0x38] sm:$0xff]
    %v868 = vpack.c.bf16 %v861, %v860
    %v869 = vpack.c.bf16 %v863, %v862
    %v870 = vpack.c.bf16 %v865, %v864
    %v871 = vpack.c.bf16 %v867, %v866
    %v872 = vld [vmem:[#allocation11] sm:$0xff]
    %v873 = vld [vmem:[#allocation11 + $0x8] sm:$0xff]
    %v874 = vld [vmem:[#allocation11 + $0x10] sm:$0xff]
    %v875 = vld [vmem:[#allocation11 + $0x18] sm:$0xff]
    %v876 = vpack.c.bf16 %v873, %v872
    %v877 = vpack.c.bf16 %v875, %v874
    %v878 = vld [vmem:[%s7] sm:$0x1]
    %v880 = vlaneseq
    %v881 = vshrl.u32 %v880, 7
    %v882 = vsub.s32 0, %v881
    %v883 = vrot.slane %v878, %v882
    %v886 = vsel %vm125, %v868, 0
    %v889 = vsel %vm125, %v869, 0
    %v892 = vsel %vm125, %v870, 0
    %v895 = vsel %vm125, %v871, 0
    %897 = vmatprep.subr.bf16.mxu0 0
    %898 = vmatpush1.bf16.msra.mxu0 0
    %899 = vmatprep.subr.bf16.mxu0 0
    %900 = vmatpush1.bf16.msra.mxu0 0
    %901 = vmatprep.subr.bf16.mxu0 0
    %902 = vmatpush1.bf16.msra.mxu0 0
    %903 = vmatprep.subr.bf16.mxu0 0
    %904 = vmatpush1.bf16.msra.mxu0 0
    %905 = vmatprep.subr.bf16.mxu0 0
    %906 = vmatpush1.bf16.msra.mxu0 0
    %907 = vmatprep.subr.bf16.mxu0 0
    %908 = vmatpush1.bf16.msra.mxu0 0
    %909 = vmatprep.subr.bf16.mxu0 0
    %910 = vmatpush1.bf16.msra.mxu0 %v877
    %911 = vmatprep.subr.bf16.mxu0 0
    %912 = vmatpush1.bf16.msra.mxu0 %v876
    %913 = vmatprep.subr.bf16.mxu0 0
    %914 = vmatpush2.bf16.msra.mxu0 0
    %915 = vmatprep.subr.bf16.mxu0 0
    %916 = vmatpush2.bf16.msra.mxu0 0
    %917 = vmatprep.subr.bf16.mxu0 0
    %918 = vmatpush2.bf16.msra.mxu0 0
    %919 = vmatprep.subr.bf16.mxu0 0
    %920 = vmatpush2.bf16.msra.mxu0 0
    %921 = vmatprep.subr.bf16.mxu0 0
    %922 = vmatpush2.bf16.msra.mxu0 0
    %923 = vmatprep.subr.bf16.mxu0 0
    %924 = vmatpush2.bf16.msra.mxu0 0
    %925 = vmatprep.subr.bf16.mxu0 0
    %926 = vmatpush2.bf16.msra.mxu0 0
    %927 = vmatprep.subr.bf16.mxu0 0
    %928 = vmatpush2.bf16.msra.mxu0 0
    %929 = vmatprep.mubr.bf16.mxu0 0
    %930 = vmatmul.mubr.bf16.gmra.mxu0 %v886
    %v931 = vpop.f32.mrf.mxu0
    %v932 = vadd.f32 %v883, %v931
    %v933 = vpop.f32.mrf.mxu0
    %v934 = vpop.f32.mrf.mxu0
    %v935 = vadd.f32 %v883, %v934
    %v936 = vpop.f32.mrf.mxu0
    %937 = vmatprep.mubr.bf16.mxu0 0
    %938 = vmatmul.mubr.bf16.gmra.mxu0 %v889
    %v939 = vpop.f32.mrf.mxu0
    %v940 = vadd.f32 %v883, %v939
    %v941 = vpop.f32.mrf.mxu0
    %v942 = vpop.f32.mrf.mxu0
    %v943 = vadd.f32 %v883, %v942
    %v944 = vpop.f32.mrf.mxu0
    %945 = vmatprep.mubr.bf16.mxu0 0
    %946 = vmatmul.mubr.bf16.gmra.mxu0 %v892
    %v947 = vpop.f32.mrf.mxu0
    %v948 = vadd.f32 %v883, %v947
    %v949 = vpop.f32.mrf.mxu0
    %v950 = vpop.f32.mrf.mxu0
    %v951 = vadd.f32 %v883, %v950
    %v952 = vpop.f32.mrf.mxu0
    %953 = vmatprep.mubr.bf16.mxu0 0
    %954 = vmatmul.mubr.bf16.gmra.mxu0 %v895
    %v955 = vpop.f32.mrf.mxu0
    %v956 = vadd.f32 %v883, %v955
    %v957 = vpop.f32.mrf.mxu0
    %v958 = vpop.f32.mrf.mxu0
    %v959 = vadd.f32 %v883, %v958
    %v960 = vpop.f32.mrf.mxu0
    %961 = vdwg.mxu0
    %vm962 = vcmask 523264
    %v963 = vsel %vm962, %v932, -inf
    %964 = vmax.xlane.f32.xlu0 %v963
    %v965 = vpop.xlane.xlu0 %964
    %v966 = vsel %vm962, %v935, -inf
    %967 = vmax.xlane.f32.xlu0 %v966
    %v968 = vpop.xlane.xlu0 %967
    %v969 = vsel %vm962, %v940, -inf
    %970 = vmax.xlane.f32.xlu0 %v969
    %v971 = vpop.xlane.xlu0 %970
    %v972 = vsel %vm962, %v943, -inf
    %973 = vmax.xlane.f32.xlu0 %v972
    %v974 = vpop.xlane.xlu0 %973
    %v975 = vsel %vm962, %v948, -inf
    %976 = vmax.xlane.f32.xlu0 %v975
    %v977 = vpop.xlane.xlu0 %976
    %v978 = vsel %vm962, %v951, -inf
    %979 = vmax.xlane.f32.xlu0 %v978
    %v980 = vpop.xlane.xlu0 %979
    %v981 = vsel %vm962, %v956, -inf
    %982 = vmax.xlane.f32.xlu0 %v981
    %v983 = vpop.xlane.xlu0 %982
    %v984 = vsel %vm962, %v959, -inf
    %985 = vmax.xlane.f32.xlu0 %v984
    %v986 = vpop.xlane.xlu0 %985
    %v987 = vsub.f32 %v932, %v965
    %v988 = vsub.f32 %v935, %v968
    %v989 = vsub.f32 %v940, %v971
    %v990 = vsub.f32 %v943, %v974
    %v991 = vsub.f32 %v948, %v977
    %v992 = vsub.f32 %v951, %v980
    %v993 = vsub.f32 %v956, %v983
    %v994 = vsub.f32 %v959, %v986
    %v995 = vmul.f32 %v987, 1.442695
    %v996 = vpow.pop %v995
    %v997 = vmul.f32 %v988, 1.442695
    %v998 = vpow.pop %v997
    %v999 = vmul.f32 %v989, 1.442695
    %v1000 = vpow.pop %v999
    %v1001 = vmul.f32 %v990, 1.442695
    %v1002 = vpow.pop %v1001
    %v1003 = vmul.f32 %v991, 1.442695
    %v1004 = vpow.pop %v1003
    %v1005 = vmul.f32 %v992, 1.442695
    %v1006 = vpow.pop %v1005
    %v1007 = vmul.f32 %v993, 1.442695
    %v1008 = vpow.pop %v1007
    %v1009 = vmul.f32 %v994, 1.442695
    %v1010 = vpow.pop %v1009
    %v1011 = vsel %vm962, %v996, 0.0
    %1012 = vadd.xlane.f32.xlu0 %v1011
    %v1013 = vpop.xlane.xlu0 %1012
    %v1014 = vsel %vm962, %v998, 0.0
    %1015 = vadd.xlane.f32.xlu0 %v1014
    %v1016 = vpop.xlane.xlu0 %1015
    %v1017 = vsel %vm962, %v1000, 0.0
    %1018 = vadd.xlane.f32.xlu0 %v1017
    %v1019 = vpop.xlane.xlu0 %1018
    %v1020 = vsel %vm962, %v1002, 0.0
    %1021 = vadd.xlane.f32.xlu0 %v1020
    %v1022 = vpop.xlane.xlu0 %1021
    %v1023 = vsel %vm962, %v1004, 0.0
    %1024 = vadd.xlane.f32.xlu0 %v1023
    %v1025 = vpop.xlane.xlu0 %1024
    %v1026 = vsel %vm962, %v1006, 0.0
    %1027 = vadd.xlane.f32.xlu0 %v1026
    %v1028 = vpop.xlane.xlu0 %1027
    %v1029 = vsel %vm962, %v1008, 0.0
    %1030 = vadd.xlane.f32.xlu0 %v1029
    %v1031 = vpop.xlane.xlu0 %1030
    %v1032 = vsel %vm962, %v1010, 0.0
    %1033 = vadd.xlane.f32.xlu0 %v1032
    %v1034 = vpop.xlane.xlu0 %1033
    %v1035 = vlog2.pop %v1013
    %v1036 = vmul.f32 %v1035, 0.6931472
    %v1037 = vlog2.pop %v1016
    %v1038 = vmul.f32 %v1037, 0.6931472
    %v1039 = vlog2.pop %v1019
    %v1040 = vmul.f32 %v1039, 0.6931472
    %v1041 = vlog2.pop %v1022
    %v1042 = vmul.f32 %v1041, 0.6931472
    %v1043 = vlog2.pop %v1025
    %v1044 = vmul.f32 %v1043, 0.6931472
    %v1045 = vlog2.pop %v1028
    %v1046 = vmul.f32 %v1045, 0.6931472
    %v1047 = vlog2.pop %v1031
    %v1048 = vmul.f32 %v1047, 0.6931472
    %v1049 = vlog2.pop %v1034
    %v1050 = vmul.f32 %v1049, 0.6931472
    %v1051 = vadd.f32 %v1036, %v965
    %v1052 = vadd.f32 %v1038, %v968
    %v1053 = vadd.f32 %v1040, %v971
    %v1054 = vadd.f32 %v1042, %v974
    %v1055 = vadd.f32 %v1044, %v977
    %v1056 = vadd.f32 %v1046, %v980
    %v1057 = vadd.f32 %v1048, %v983
    %v1058 = vadd.f32 %v1050, %v986
    %v1059 = vsub.f32 %v932, %v1051
    %v1060 = vsub.f32 %v935, %v1052
    %v1061 = vsub.f32 %v940, %v1053
    %v1062 = vsub.f32 %v943, %v1054
    %v1063 = vsub.f32 %v948, %v1055
    %v1064 = vsub.f32 %v951, %v1056
    %v1065 = vsub.f32 %v956, %v1057
    %v1066 = vsub.f32 %v959, %v1058
    %1067 = vst.msk [vmem:[#allocation12] sm:$0xff] %vm962, %v1059
    %1068 = vst.msk [vmem:[#allocation12 + $0x8] sm:$0xff] %vm962, %v1060
    %1069 = vst.msk [vmem:[#allocation12 + $0x10] sm:$0xff] %vm962, %v1061
    %1070 = vst.msk [vmem:[#allocation12 + $0x18] sm:$0xff] %vm962, %v1062
    %1071 = vst.msk [vmem:[#allocation12 + $0x20] sm:$0xff] %vm962, %v1063
    %1072 = vst.msk [vmem:[#allocation12 + $0x28] sm:$0xff] %vm962, %v1064
    %1073 = vst.msk [vmem:[#allocation12 + $0x30] sm:$0xff] %vm962, %v1065
    %1074 = vst.msk [vmem:[#allocation12 + $0x38] sm:$0xff] %vm962, %v1066
    // Predicated region
    $region54: #{tpu_custom_call.1} parent=1 // pred_check
      _
    $region55: #{tpu_custom_call.1} parent=1 // pred_check_branch
      %1076 = sbr.rel (0) target = $region57
    $region56: #{tpu_custom_call.1} parent=1 // pred_region
      %s1078 = ssub.s32 1024, 1024
      %1079 = vsyncadd [#allocation5], %s1078
      %s1080 = sshll.u32 [#allocation12], 4
      %s1081 = int_to_ptr.vmem [resolvable:$true] %s1080
      %1086 = dma.vmem_to_hbm [thread:$0]  %s1081, 1024, %s8, [#allocation5], 128, 128, 8
    $region57: #{tpu_custom_call.1} parent=1 // pred_fallthru
      _
    // Predicated region
    $region58: #{tpu_custom_call.1} parent=1 // pred_check
      _
    $region59: #{tpu_custom_call.1} parent=1 // pred_check_branch
      %1088 = sbr.rel (0) target = $region61
    $region60: #{tpu_custom_call.1} parent=1 // pred_region
      %s1090 = ssub.s32 128, 128
      %1091 = vsyncadd [#allocation14], %s1090
      %s1093 = sshll.u32 [#allocation13], 4
      %s1094 = int_to_ptr.vmem [resolvable:$true] %s1093
      %1096 = dma.vmem_to_hbm [thread:$0]  %s1094, 128, %s9, [#allocation14]
    $region61: #{tpu_custom_call.1} parent=1 // pred_fallthru
      _
    // Predicated region
    $region62: #{tpu_custom_call.1} parent=1 // pred_check
      _
    $region63: #{tpu_custom_call.1} parent=1 // pred_check_branch
      %1098 = sbr.rel (0) target = $region65
    $region64: #{tpu_custom_call.1} parent=1 // pred_region
      %1099 = dma.done [#allocation5], 1024
    $region65: #{tpu_custom_call.1} parent=1 // pred_fallthru
      _
    // Predicated region
    $region66: #{tpu_custom_call.1} parent=1 // pred_check
      _
    $region67: #{tpu_custom_call.1} parent=1 // pred_check_branch
      %1101 = sbr.rel (0) target = $region69
    $region68: #{tpu_custom_call.1} parent=1 // pred_region
      %1102 = dma.done [#allocation14], 128
    $region69: #{tpu_custom_call.1} parent=1 // pred_fallthru
      _
    %1103 = vsyncpa [#allocation4], 1
    %1104 = vsyncpa [#allocation7], 1
    %1105 = vsyncpa [#allocation10], 1
    %1106 = vsyncpa [#allocation5], 1
    %1107 = vsyncpa [#allocation14], 1

</llo_original>
